<compile_context>
chip_gen: v5e
topology: v5e:2x2
jax: 0.10.0
libtpu: 0.0.40
codegen_flags: <defaults>
</compile_context>

<pallas_src>
import jax
import jax.numpy as jnp
from jax.experimental import pallas as pl
from jax.experimental.pallas import tpu as pltpu

HID1 = 512      # dl1 out features
HID2 = 128      # dl2 out features
LANE = 128      # TPU lane width


def _round_up(x, m):
    return ((x + m - 1) // m) * m


def _cdiv(a, b):
    return -(-a // b)


def _vmem_capacity_bytes():
    """Physical VMEM per TensorCore; conservative 64 MiB fallback (v7x)."""
    try:
        info = pltpu.get_tpu_info()
        for name in ("vmem_capacity_bytes", "vmem_bytes", "vmem_size_bytes"):
            v = getattr(info, name, None)
            if v:
                return int(v)
    except Exception:
        pass
    return 64 * 1024 * 1024


def _hd_classifier_kernel(x_ref, w1_ref, b1_ref, w23_ref, b23_ref, o_ref,
                          acc_ref):
    k = pl.program_id(1)

    @pl.when(k == 0)
    def _init():
        acc_ref[...] = jnp.zeros_like(acc_ref)

    # Layer 1 partial matmul over this K slice.  f32 x is cast to bf16 on the
    # VPU here (no separate XLA pass over x); f32 MXU accumulation.
    acc_ref[...] += jnp.dot(x_ref[...].astype(w1_ref.dtype), w1_ref[...],
                            preferred_element_type=jnp.float32)

    @pl.when(k == pl.num_programs(1) - 1)
    def _finish():
        # Folded BN1 bias + ReLU epilogue in f32 (v5e has no bf16 VPU path);
        # dropout is identity in eval mode.
        h1 = jnp.maximum(acc_ref[...] + b1_ref[...], 0.0)
        # Layers 2+3 fused (eval mode): (dl2 + BN2 + dropout) o dl3 is affine.
        out = jnp.dot(h1.astype(w23_ref.dtype), w23_ref[...],
                      preferred_element_type=jnp.float32)
        o_ref[...] = (out + b23_ref[...]).astype(o_ref.dtype)   # lane-dense store


def prepare_kernel_params(params, *, k_tile=None, max_k_tile=2048,
                          keep_w23_f32=False):
    """Fold eval-mode BN into the linears, fuse layers 2+3, pad K/out lanes."""
    w1, b1 = params["w1"], params["b1"]
    w2, b2 = params["w2"], params["b2"]
    w3, b3 = params["w3"], params["b3"]
    s1, t1 = params["s1"], params["t1"]
    s2, t2 = params["s2"], params["t2"]

    in_dim = w1.shape[0]
    # K tiling: lane-align in_dim; split into <= max_k_tile chunks for large
    # (HD-sized) in_dim so per-step VMEM stays within v7x's 64 MiB.
    in_pad128 = _round_up(in_dim, LANE)
    if k_tile is None:
        nk = max(1, _cdiv(in_pad128, max_k_tile))
        k_tile = _round_up(_cdiv(in_pad128, nk), LANE)
    else:
        k_tile = _round_up(k_tile, LANE)
    in_pad = _round_up(in_pad128, k_tile)

    # BN1 folded into dl1 (per output column); zero-pad K rows (so padded x
    # columns contribute nothing).
    w1f = w1 * s1                       # [in, 512]
    b1f = b1 * s1 + t1                  # [1, 512]
    if in_pad != in_dim:
        w1f = jnp.pad(w1f, ((0, in_pad - in_dim), (0, 0)))

    # BN2 folded into dl2, then dl2/dl3 fused (dropout is identity in eval).
    w2f = w2 * s2                       # [512, 128]
    b2f = b2 * s2 + t2                  # [1, 128]
    w23 = w2f @ w3                      # [512, out_dim]
    b23 = b2f @ w3 + b3                 # [1, out_dim]

    out_dim = w3.shape[1]
    out_pad = _round_up(out_dim, LANE)
    if out_pad != out_dim:
        w23 = jnp.pad(w23, ((0, 0), (0, out_pad - out_dim)))
        b23 = jnp.pad(b23, ((0, 0), (0, out_pad - out_dim)))

    return dict(
        w1=w1f.astype(jnp.bfloat16),
        b1=b1f.astype(jnp.float32),
        w23=(w23.astype(jnp.float32) if keep_w23_f32
             else w23.astype(jnp.bfloat16)),
        b23=b23.astype(jnp.float32),
        in_dim=in_dim, in_pad=in_pad, k_tile=k_tile,
        out_dim=out_dim, out_pad=out_pad,
    )


def _choose_tb(B, batch_tile):
    if B > batch_tile:
        return batch_tile
    if B >= 32:
        # >= 2 grid steps so v7x's two TensorCores both get work.
        return min(_round_up(_cdiv(B, 2), 16), batch_tile)
    return B


def _vmem_bytes(tb, tk, out_pad, x_isize, out_isize, nk, w23_isize):
    w1_bufs = 1 if nk == 1 else 2        # resident if K is not tiled
    return (2 * tb * tk * x_isize                # x tile, double-buffered
            + w1_bufs * tk * HID1 * 2            # W1 (bf16)
            + HID1 * 4                           # b1
            + HID1 * out_pad * w23_isize         # W23
            + out_pad * 4                        # b23
            + 2 * tb * out_pad * out_isize       # out tile, double-buffered
            + tb * HID1 * 4)                     # f32 accumulator scratch


def hd_classifier_forward(x, kparams, *, batch_tile=2048,
                          out_dtype=jnp.bfloat16):
    """x: [B, in_dim] f32 (or bf16).  kparams: output of prepare_kernel_params.

    Returns [B, out_dim] in `out_dtype` (bf16 by default — halves output
    writeback; values are computed with f32 accumulation).
    """
    B, in_dim = x.shape
    assert in_dim == kparams["in_dim"]
    in_pad, tk = kparams["in_pad"], kparams["k_tile"]
    out_dim, out_pad = kparams["out_dim"], kparams["out_pad"]
    w1, b1 = kparams["w1"], kparams["b1"]
    w23, b23 = kparams["w23"], kparams["b23"]
    nk = in_pad // tk

    # One-time lane-alignment pad of x (only when in_dim is not K-aligned);
    # padded columns hit zero rows of W1, so values are unchanged.
    if in_pad != in_dim:
        x = jnp.pad(x, ((0, 0), (0, in_pad - in_dim)))

    x_isize = jnp.dtype(x.dtype).itemsize
    out_isize = jnp.dtype(out_dtype).itemsize
    w23_isize = jnp.dtype(w23.dtype).itemsize

    # Batch tile + per-generation VMEM budget (shrink tb if it would not fit).
    tb = _choose_tb(B, batch_tile)
    budget = int(_vmem_capacity_bytes() * 0.8)
    headroom = 4 << 20
    while (tb > 128 and
           _vmem_bytes(tb, tk, out_pad, x_isize, out_isize, nk, w23_isize)
           + headroom > budget):
        tb = _round_up(tb // 2, 16)
    nb = _cdiv(B, tb)
    vmem_limit = min(budget, max(
        32 << 20,
        _vmem_bytes(tb, tk, out_pad, x_isize, out_isize, nk, w23_isize)
        + headroom))

    flops = 2 * B * (in_pad * HID1 + HID1 * out_pad)
    bytes_accessed = (B * in_pad * x_isize + B * out_pad * out_isize
                      + w1.size * 2 + w23.size * w23_isize
                      + b1.size * 4 + b23.size * 4)

    def _call(single_buffer_resident):
        resident = (dict(pipeline_mode=pl.Buffered(1))
                    if single_buffer_resident else {})
        w1_kwargs = resident if nk == 1 else {}   # W1 varies with k when tiled
        grid_spec = pltpu.PrefetchScalarGridSpec(
            num_scalar_prefetch=0,
            grid=(nb, nk),
            in_specs=[
                pl.BlockSpec((tb, tk), lambda i, k: (i, k)),                 # x
                pl.BlockSpec((tk, HID1), lambda i, k: (k, 0), **w1_kwargs),  # W1
                pl.BlockSpec((1, HID1), lambda i, k: (0, 0), **resident),    # b1
                pl.BlockSpec((HID1, out_pad), lambda i, k: (0, 0), **resident),  # W23
                pl.BlockSpec((1, out_pad), lambda i, k: (0, 0), **resident),     # b23
            ],
            out_specs=pl.BlockSpec((tb, out_pad), lambda i, k: (i, 0)),
            scratch_shapes=[pltpu.VMEM((tb, HID1), jnp.float32)],
        )
        return pl.pallas_call(
            _hd_classifier_kernel,
            out_shape=jax.ShapeDtypeStruct((B, out_pad), out_dtype),
            grid_spec=grid_spec,
            compiler_params=pltpu.CompilerParams(
                dimension_semantics=("parallel", "arbitrary"),
                vmem_limit_bytes=int(vmem_limit)),
            cost_estimate=pl.CostEstimate(
                flops=flops, transcendentals=0,
                bytes_accessed=int(bytes_accessed)),
        )(x, w1, b1, w23, b23)

    try:
        out = _call(True)
    except Exception:
        # Fallback if this JAX version rejects single-buffered resident inputs
        # (pl.Buffered(1)); default double-buffering is correct, just uses
        # more VMEM.
        out = _call(False)

    return out[:, :out_dim] if out_pad != out_dim else out


def init_params(key, in_dim, out_dim, eps=1e-5):
    """Deterministic synthetic parameters (kernel layout: W is [in, out])."""
    ks = jax.random.split(key, 16)

    def lin(kw, kb, fan_in, fan_out):
        bound = 1.0 / jnp.sqrt(fan_in)
        w = jax.random.uniform(kw, (fan_in, fan_out), jnp.float32, -bound, bound)
        b = jax.random.uniform(kb, (1, fan_out), jnp.float32, -bound, bound)
        return w, b

    w1, b1 = lin(ks[0], ks[1], in_dim, HID1)
    w2, b2 = lin(ks[2], ks[3], HID1, HID2)
    w3, b3 = lin(ks[4], ks[5], HID2, out_dim)

    def bn(kg, kb, km, kv, n):
        gamma = 1.0 + 0.1 * jax.random.normal(kg, (1, n), jnp.float32)
        beta = 0.1 * jax.random.normal(kb, (1, n), jnp.float32)
        rmean = 0.1 * jax.random.normal(km, (1, n), jnp.float32)
        rvar = jnp.abs(1.0 + 0.1 * jax.random.normal(kv, (1, n), jnp.float32))
        # Fold BN (eval mode) into a per-feature scale/shift.
        scale = gamma / jnp.sqrt(rvar + eps)
        shift = beta - rmean * scale
        return scale, shift

    s1, t1 = bn(ks[6], ks[7], ks[8], ks[9], HID1)
    s2, t2 = bn(ks[10], ks[11], ks[12], ks[13], HID2)

    return dict(w1=w1, b1=b1, s1=s1, t1=t1,
                w2=w2, b2=b2, s2=s2, t2=t2,
                w3=w3, b3=b3)


def reference_forward(x, p):
    """Unfused f32 eval-mode reference (matches the PyTorch module)."""
    h1 = jnp.maximum((x @ p["w1"] + p["b1"]) * p["s1"] + p["t1"], 0.0)
    h2 = (h1 @ p["w2"] + p["b2"]) * p["s2"] + p["t2"]
    return h2 @ p["w3"] + p["b3"]


if __name__ == "__main__":
    key = jax.random.PRNGKey(0)

    # Test 1: tiny shapes — single K block (nk=1), single batch tile.
    B, IN_DIM, OUT_DIM = 8, 32, 8
    k1, k2, key = jax.random.split(key, 3)
    x = jax.random.normal(k1, (B, IN_DIM), jnp.float32)
    params = init_params(k2, IN_DIM, OUT_DIM)
    kparams = prepare_kernel_params(params)
    out = jax.block_until_ready(hd_classifier_forward(x, kparams))
    ref = reference_forward(x, params)
    assert out.shape == (B, OUT_DIM)
    # bf16 matmul inputs / bf16 output with f32 accumulation: relaxed tolerance.
    assert jnp.allclose(out.astype(jnp.float32), ref, atol=3e-2, rtol=3e-2), \
        "mismatch vs. JAX reference (test 1)"

    # Test 2: exercises the K-tiled accumulator path (nk=2), two batch tiles
    # (nb=2, partial last tile) and the padded-output slice.
    B2, IN2, OUT2 = 48, 256, 10
    k3, k4 = jax.random.split(key)
    x2 = jax.random.normal(k3, (B2, IN2), jnp.float32)
    params2 = init_params(k4, IN2, OUT2)
    kparams2 = prepare_kernel_params(params2, k_tile=128)
    out2 = jax.block_until_ready(hd_classifier_forward(x2, kparams2))
    ref2 = reference_forward(x2, params2)
    assert out2.shape == (B2, OUT2)
    assert jnp.allclose(out2.astype(jnp.float32), ref2, atol=3e-2, rtol=3e-2), \
        "mismatch vs. JAX reference (test 2)"

    print("KERNEL_OK")
</pallas_src>

<mosaic_0001>
module attributes {stable_mosaic.version = 11 : i64} {
  func.func @_hd_classifier_kernel(%arg0: i32, %arg1: i32, %arg2: memref<8x128xf32, #tpu.memory_space<vmem>>, %arg3: memref<128x512xbf16, #tpu.memory_space<vmem>>, %arg4: memref<1x512xf32, #tpu.memory_space<vmem>>, %arg5: memref<512x128xbf16, #tpu.memory_space<vmem>>, %arg6: memref<1x128xf32, #tpu.memory_space<vmem>>, %arg7: memref<8x128xbf16, #tpu.memory_space<vmem>>, %arg8: memref<8x512xf32, #tpu.memory_space<vmem>>) attributes {dimension_semantics = [#tpu.dimension_semantics<parallel>, #tpu.dimension_semantics<arbitrary>], iteration_bounds = array<i64: 1, 1>, scalar_prefetch = 0 : i64, scratch_operands = 1 : i64, tpu.core_type = #tpu.core_type<tc>, window_params = [{transform_indices = @transform_0, window_bounds = array<i64: 8, 128>}, {pipeline_mode = #tpu.pipeline_mode<synchronous>, transform_indices = @transform_1, window_bounds = array<i64: 128, 512>}, {pipeline_mode = #tpu.pipeline_mode<synchronous>, transform_indices = @transform_2, window_bounds = array<i64: 1, 512>}, {pipeline_mode = #tpu.pipeline_mode<synchronous>, transform_indices = @transform_3, window_bounds = array<i64: 512, 128>}, {pipeline_mode = #tpu.pipeline_mode<synchronous>, transform_indices = @transform_4, window_bounds = array<i64: 1, 128>}, {transform_indices = @transform_5, window_bounds = array<i64: 8, 128>}]} {
    %c0_i32 = arith.constant 0 : i32
    %0 = arith.cmpi eq, %arg1, %c0_i32 : i32
    %1 = arith.extui %0 : i1 to i32
    %c0_i32_0 = arith.constant 0 : i32
    %2 = arith.cmpi ne, %1, %c0_i32_0 : i32
    scf.if %2 {
      %cst_10 = arith.constant 0.000000e+00 : f32
      %13 = vector.broadcast %cst_10 : f32 to vector<8x512xf32>
      %c0_11 = arith.constant 0 : index
      %c0_12 = arith.constant 0 : index
      %14 = vector.load %arg8[%c0_11, %c0_12] : memref<8x512xf32, #tpu.memory_space<vmem>>, vector<8x512xf32>
      tpu.vector_store %arg8[%c0_11, %c0_12], %13 {strides = array<i32>} : memref<8x512xf32, #tpu.memory_space<vmem>>, vector<8x512xf32>,
    } else {
    }
    %c0 = arith.constant 0 : index
    %c0_1 = arith.constant 0 : index
    %3 = vector.load %arg8[%c0, %c0_1] : memref<8x512xf32, #tpu.memory_space<vmem>>, vector<8x512xf32>
    %c0_2 = arith.constant 0 : index
    %c0_3 = arith.constant 0 : index
    %4 = vector.load %arg2[%c0_2, %c0_3] : memref<8x128xf32, #tpu.memory_space<vmem>>, vector<8x128xf32>
    %5 = arith.truncf %4 : vector<8x128xf32> to vector<8x128xbf16>
    %c0_4 = arith.constant 0 : index
    %c0_5 = arith.constant 0 : index
    %6 = vector.load %arg3[%c0_4, %c0_5] : memref<128x512xbf16, #tpu.memory_space<vmem>>, vector<128x512xbf16>
    %cst = arith.constant dense<0.000000e+00> : vector<8x512xf32>
    %7 = tpu.matmul %5, %6, %cst {dimension_numbers = #tpu.dot_dimension_numbers<[1], [0], [0], [1], [0, 0, 1, 1], [], []>} : vector<8x128xbf16>, vector<128x512xbf16>, vector<8x512xf32> -> vector<8x512xf32>
    %8 = arith.addf %3, %7 : vector<8x512xf32>
    %c0_6 = arith.constant 0 : index
    %c0_7 = arith.constant 0 : index
    %9 = vector.load %arg8[%c0_6, %c0_7] : memref<8x512xf32, #tpu.memory_space<vmem>>, vector<8x512xf32>
    tpu.vector_store %arg8[%c0_6, %c0_7], %8 {strides = array<i32>} : memref<8x512xf32, #tpu.memory_space<vmem>>, vector<8x512xf32>,
    %c0_i32_8 = arith.constant 0 : i32
    %10 = arith.cmpi eq, %arg1, %c0_i32_8 : i32
    %11 = arith.extui %10 : i1 to i32
    %c0_i32_9 = arith.constant 0 : i32
    %12 = arith.cmpi ne, %11, %c0_i32_9 : i32
    scf.if %12 {
      %c0_10 = arith.constant 0 : index
      %c0_11 = arith.constant 0 : index
      %13 = vector.load %arg8[%c0_10, %c0_11] : memref<8x512xf32, #tpu.memory_space<vmem>>, vector<8x512xf32>
      %c0_12 = arith.constant 0 : index
      %c0_13 = arith.constant 0 : index
      %14 = vector.load %arg4[%c0_12, %c0_13] : memref<1x512xf32, #tpu.memory_space<vmem>>, vector<1x512xf32>
      %15 = vector.broadcast %14 : vector<1x512xf32> to vector<8x512xf32>
      %16 = arith.addf %13, %15 : vector<8x512xf32>
      %cst_14 = arith.constant 0.000000e+00 : f32
      %17 = vector.broadcast %cst_14 : f32 to vector<8x512xf32>
      %18 = arith.maximumf %16, %17 : vector<8x512xf32>
      %19 = arith.truncf %18 : vector<8x512xf32> to vector<8x512xbf16>
      %c0_15 = arith.constant 0 : index
      %c0_16 = arith.constant 0 : index
      %20 = vector.load %arg5[%c0_15, %c0_16] : memref<512x128xbf16, #tpu.memory_space<vmem>>, vector<512x128xbf16>
      %cst_17 = arith.constant dense<0.000000e+00> : vector<8x128xf32>
      %21 = tpu.matmul %19, %20, %cst_17 {dimension_numbers = #tpu.dot_dimension_numbers<[1], [0], [0], [1], [0, 0, 1, 1], [], []>} : vector<8x512xbf16>, vector<512x128xbf16>, vector<8x128xf32> -> vector<8x128xf32>
      %c0_18 = arith.constant 0 : index
      %c0_19 = arith.constant 0 : index
      %22 = vector.load %arg6[%c0_18, %c0_19] : memref<1x128xf32, #tpu.memory_space<vmem>>, vector<1x128xf32>
      %23 = vector.broadcast %22 : vector<1x128xf32> to vector<8x128xf32>
      %24 = arith.addf %21, %23 : vector<8x128xf32>
      %25 = arith.truncf %24 : vector<8x128xf32> to vector<8x128xbf16>
      %c0_20 = arith.constant 0 : index
      %c0_21 = arith.constant 0 : index
      %26 = vector.load %arg7[%c0_20, %c0_21] : memref<8x128xbf16, #tpu.memory_space<vmem>>, vector<8x128xbf16>
      tpu.vector_store %arg7[%c0_20, %c0_21], %25 {strides = array<i32>} : memref<8x128xbf16, #tpu.memory_space<vmem>>, vector<8x128xbf16>,
    } else {
    }
    return
  }
  func.func @transform_0(%arg0: i32, %arg1: i32) -> (i32, i32) {
    %c0_i32 = arith.constant 0 : i32
    return %arg0, %arg1 : i32, i32
  }
  func.func @transform_1(%arg0: i32, %arg1: i32) -> (i32, i32) {
    %c0_i32 = arith.constant 0 : i32
    %c0_i32_0 = arith.constant 0 : i32
    return %arg1, %c0_i32 : i32, i32
  }
  func.func @transform_2(%arg0: i32, %arg1: i32) -> (i32, i32) {
    %c0_i32 = arith.constant 0 : i32
    %c0_i32_0 = arith.constant 0 : i32
    %c0_i32_1 = arith.constant 0 : i32
    return %c0_i32, %c0_i32_0 : i32, i32
  }
  func.func @transform_3(%arg0: i32, %arg1: i32) -> (i32, i32) {
    %c0_i32 = arith.constant 0 : i32
    %c0_i32_0 = arith.constant 0 : i32
    %c0_i32_1 = arith.constant 0 : i32
    return %c0_i32, %c0_i32_0 : i32, i32
  }
  func.func @transform_4(%arg0: i32, %arg1: i32) -> (i32, i32) {
    %c0_i32 = arith.constant 0 : i32
    %c0_i32_0 = arith.constant 0 : i32
    %c0_i32_1 = arith.constant 0 : i32
    return %c0_i32, %c0_i32_0 : i32, i32
  }
  func.func @transform_5(%arg0: i32, %arg1: i32) -> (i32, i32) {
    %c0_i32 = arith.constant 0 : i32
    %c0_i32_0 = arith.constant 0 : i32
    return %arg0, %c0_i32 : i32, i32
  }
}

module attributes {stable_mosaic.version = 11 : i64} {
  func.func @_hd_classifier_kernel(%arg0: i32, %arg1: i32, %arg2: memref<8x128xf32, #tpu.memory_space<vmem>>, %arg3: memref<128x512xbf16, #tpu.memory_space<vmem>>, %arg4: memref<1x512xf32, #tpu.memory_space<vmem>>, %arg5: memref<512x128xbf16, #tpu.memory_space<vmem>>, %arg6: memref<1x128xf32, #tpu.memory_space<vmem>>, %arg7: memref<8x128xbf16, #tpu.memory_space<vmem>>, %arg8: memref<8x512xf32, #tpu.memory_space<vmem>>) attributes {dimension_semantics = [#tpu.dimension_semantics<parallel>, #tpu.dimension_semantics<arbitrary>], iteration_bounds = array<i64: 1, 1>, scalar_prefetch = 0 : i64, scratch_operands = 1 : i64, tpu.core_type = #tpu.core_type<tc>, window_params = [{transform_indices = @transform_0, window_bounds = array<i64: 8, 128>}, {transform_indices = @transform_1, window_bounds = array<i64: 128, 512>}, {pipeline_mode = #tpu.pipeline_mode<synchronous>, transform_indices = @transform_2, window_bounds = array<i64: 1, 512>}, {pipeline_mode = #tpu.pipeline_mode<synchronous>, transform_indices = @transform_3, window_bounds = array<i64: 512, 128>}, {pipeline_mode = #tpu.pipeline_mode<synchronous>, transform_indices = @transform_4, window_bounds = array<i64: 1, 128>}, {transform_indices = @transform_5, window_bounds = array<i64: 8, 128>}]} {
    %c0_i32 = arith.constant 0 : i32
    %0 = arith.cmpi eq, %arg1, %c0_i32 : i32
    %1 = arith.extui %0 : i1 to i32
    %c0_i32_0 = arith.constant 0 : i32
    %2 = arith.cmpi ne, %1, %c0_i32_0 : i32
    scf.if %2 {
      %cst_10 = arith.constant 0.000000e+00 : f32
      %13 = vector.broadcast %cst_10 : f32 to vector<8x512xf32>
      %c0_11 = arith.constant 0 : index
      %c0_12 = arith.constant 0 : index
      %14 = vector.load %arg8[%c0_11, %c0_12] : memref<8x512xf32, #tpu.memory_space<vmem>>, vector<8x512xf32>
      tpu.vector_store %arg8[%c0_11, %c0_12], %13 {strides = array<i32>} : memref<8x512xf32, #tpu.memory_space<vmem>>, vector<8x512xf32>,
    } else {
    }
    %c0 = arith.constant 0 : index
    %c0_1 = arith.constant 0 : index
    %3 = vector.load %arg8[%c0, %c0_1] : memref<8x512xf32, #tpu.memory_space<vmem>>, vector<8x512xf32>
    %c0_2 = arith.constant 0 : index
    %c0_3 = arith.constant 0 : index
    %4 = vector.load %arg2[%c0_2, %c0_3] : memref<8x128xf32, #tpu.memory_space<vmem>>, vector<8x128xf32>
    %5 = arith.truncf %4 : vector<8x128xf32> to vector<8x128xbf16>
    %c0_4 = arith.constant 0 : index
    %c0_5 = arith.constant 0 : index
    %6 = vector.load %arg3[%c0_4, %c0_5] : memref<128x512xbf16, #tpu.memory_space<vmem>>, vector<128x512xbf16>
    %cst = arith.constant dense<0.000000e+00> : vector<8x512xf32>
    %7 = tpu.matmul %5, %6, %cst {dimension_numbers = #tpu.dot_dimension_numbers<[1], [0], [0], [1], [0, 0, 1, 1], [], []>} : vector<8x128xbf16>, vector<128x512xbf16>, vector<8x512xf32> -> vector<8x512xf32>
    %8 = arith.addf %3, %7 : vector<8x512xf32>
    %c0_6 = arith.constant 0 : index
    %c0_7 = arith.constant 0 : index
    %9 = vector.load %arg8[%c0_6, %c0_7] : memref<8x512xf32, #tpu.memory_space<vmem>>, vector<8x512xf32>
    tpu.vector_store %arg8[%c0_6, %c0_7], %8 {strides = array<i32>} : memref<8x512xf32, #tpu.memory_space<vmem>>, vector<8x512xf32>,
    %c0_i32_8 = arith.constant 0 : i32
    %10 = arith.cmpi eq, %arg1, %c0_i32_8 : i32
    %11 = arith.extui %10 : i1 to i32
    %c0_i32_9 = arith.constant 0 : i32
    %12 = arith.cmpi ne, %11, %c0_i32_9 : i32
    scf.if %12 {
      %c0_10 = arith.constant 0 : index
      %c0_11 = arith.constant 0 : index
      %13 = vector.load %arg8[%c0_10, %c0_11] : memref<8x512xf32, #tpu.memory_space<vmem>>, vector<8x512xf32>
      %c0_12 = arith.constant 0 : index
      %c0_13 = arith.constant 0 : index
      %14 = vector.load %arg4[%c0_12, %c0_13] : memref<1x512xf32, #tpu.memory_space<vmem>>, vector<1x512xf32>
      %15 = vector.broadcast %14 : vector<1x512xf32> to vector<8x512xf32>
      %16 = arith.addf %13, %15 : vector<8x512xf32>
      %cst_14 = arith.constant 0.000000e+00 : f32
      %17 = vector.broadcast %cst_14 : f32 to vector<8x512xf32>
      %18 = arith.maximumf %16, %17 : vector<8x512xf32>
      %19 = arith.truncf %18 : vector<8x512xf32> to vector<8x512xbf16>
      %c0_15 = arith.constant 0 : index
      %c0_16 = arith.constant 0 : index
      %20 = vector.load %arg5[%c0_15, %c0_16] : memref<512x128xbf16, #tpu.memory_space<vmem>>, vector<512x128xbf16>
      %cst_17 = arith.constant dense<0.000000e+00> : vector<8x128xf32>
      %21 = tpu.matmul %19, %20, %cst_17 {dimension_numbers = #tpu.dot_dimension_numbers<[1], [0], [0], [1], [0, 0, 1, 1], [], []>} : vector<8x512xbf16>, vector<512x128xbf16>, vector<8x128xf32> -> vector<8x128xf32>
      %c0_18 = arith.constant 0 : index
      %c0_19 = arith.constant 0 : index
      %22 = vector.load %arg6[%c0_18, %c0_19] : memref<1x128xf32, #tpu.memory_space<vmem>>, vector<1x128xf32>
      %23 = vector.broadcast %22 : vector<1x128xf32> to vector<8x128xf32>
      %24 = arith.addf %21, %23 : vector<8x128xf32>
      %25 = arith.truncf %24 : vector<8x128xf32> to vector<8x128xbf16>
      %c0_20 = arith.constant 0 : index
      %c0_21 = arith.constant 0 : index
      %26 = vector.load %arg7[%c0_20, %c0_21] : memref<8x128xbf16, #tpu.memory_space<vmem>>, vector<8x128xbf16>
      tpu.vector_store %arg7[%c0_20, %c0_21], %25 {strides = array<i32>} : memref<8x128xbf16, #tpu.memory_space<vmem>>, vector<8x128xbf16>,
    } else {
    }
    return
  }
  func.func @transform_0(%arg0: i32, %arg1: i32) -> (i32, i32) {
    %c0_i32 = arith.constant 0 : i32
    return %arg0, %arg1 : i32, i32
  }
  func.func @transform_1(%arg0: i32, %arg1: i32) -> (i32, i32) {
    %c0_i32 = arith.constant 0 : i32
    %c0_i32_0 = arith.constant 0 : i32
    return %arg1, %c0_i32 : i32, i32
  }
  func.func @transform_2(%arg0: i32, %arg1: i32) -> (i32, i32) {
    %c0_i32 = arith.constant 0 : i32
    %c0_i32_0 = arith.constant 0 : i32
    %c0_i32_1 = arith.constant 0 : i32
    return %c0_i32, %c0_i32_0 : i32, i32
  }
  func.func @transform_3(%arg0: i32, %arg1: i32) -> (i32, i32) {
    %c0_i32 = arith.constant 0 : i32
    %c0_i32_0 = arith.constant 0 : i32
    %c0_i32_1 = arith.constant 0 : i32
    return %c0_i32, %c0_i32_0 : i32, i32
  }
  func.func @transform_4(%arg0: i32, %arg1: i32) -> (i32, i32) {
    %c0_i32 = arith.constant 0 : i32
    %c0_i32_0 = arith.constant 0 : i32
    %c0_i32_1 = arith.constant 0 : i32
    return %c0_i32, %c0_i32_0 : i32, i32
  }
  func.func @transform_5(%arg0: i32, %arg1: i32) -> (i32, i32) {
    %c0_i32 = arith.constant 0 : i32
    %c0_i32_0 = arith.constant 0 : i32
    return %arg0, %c0_i32 : i32, i32
  }
}

</mosaic_0001>

<llo_original>
// kernel: tpu_custom_call.1
$region0: #{tpu_custom_call.1}
  #allocation0 [shape = 'u32[]', space=smem, size = 0x4, offset = 0x4, fixed_abs, tag = 'smem constant byte address 0x4 - core index']
  #allocation1 [shape = 'u32[72,128]{1,0:T(1,128)}', space=vmem, size = 0x9000, scoped, tag = 'internal scratch']
  #allocation2 [shape = 'f32[8,512]{1,0:T(8,128)}', space=vmem, size = 0x4000, scoped, tag = 'scratch operand']
  %s0 = inlined_call_operand.hbm [shape: f32[8,128], index: 0, kind: input, shape index: {}]
  %s1 = inlined_call_operand.hbm [shape: bf16[128,512], index: 1, kind: input, shape index: {}]
  %s2 = inlined_call_operand.hbm [shape: f32[1,512], index: 2, kind: input, shape index: {}]
  %s3 = inlined_call_operand.hbm [shape: bf16[512,128], index: 3, kind: input, shape index: {}]
  %s4 = inlined_call_operand.vmem [shape: f32[1,128], index: 4, kind: input, shape index: {}]
  %s5 = inlined_call_operand.hbm [shape: bf16[8,128], index: 5, kind: output, shape index: {}]
  %s6 = sld [smem:[#allocation0]]
  $region54: #{tpu_custom_call.1} parent=0
    _
  %s8 = ssub.s32 1, %s6
  %s9 = scalar_select 0, %s8, %s6
  $region1: #{tpu_custom_call.1} parent=0
    #allocation3 [shape = 'u8[4096]{0}', space=vmem, size = 0x1000, scoped, tag = 'input window, operand 0, single buffered']
    #allocation4 [shape = 's32[1]{0}', space=sflag, size = 0x4, scoped, tag = 'scoped memory for tpu_custom_call.1']
    #allocation5 [shape = 's32[1]{0}', space=sflag, size = 0x4, scoped, tag = 'scoped memory for tpu_custom_call.1']
    #allocation6 [shape = 'u8[131072]{0}', space=vmem, size = 0x20000, scoped, tag = 'input window, operand 1, single buffered']
    #allocation7 [shape = 's32[1]{0}', space=sflag, size = 0x4, scoped, tag = 'scoped memory for tpu_custom_call.1']
    #allocation8 [shape = 'u8[2048]{0}', space=vmem, size = 0x800, scoped, tag = 'input window, operand 2, single buffered']
    #allocation9 [shape = 'u8[131072]{0}', space=vmem, size = 0x20000, scoped, tag = 'input window, operand 3, single buffered']
    #allocation10 [shape = 's32[1]{0}', space=sflag, size = 0x4, scoped, tag = 'scoped memory for tpu_custom_call.1']
    #allocation11 [shape = 'u8[2048]{0}', space=vmem, size = 0x800, scoped, tag = 'output window, operand 0, single buffered']
    %10 = vsyncpa [#allocation4], 0
    %11 = vsyncpa [#allocation7], 0
    %12 = vsyncpa [#allocation10], 0
    %13 = vsyncpa [#allocation5], 0
    // Predicated region
    $region2: #{tpu_custom_call.1} parent=1 // pred_check
      _
    $region3: #{tpu_custom_call.1} parent=1 // pred_check_branch
      %15 = sbr.rel (0) target = $region5
    $region4: #{tpu_custom_call.1} parent=1 // pred_region
      %17 = vsyncadd [#allocation4], 0
      %s19 = sshll.u32 %s0, 4
      %s20 = int_to_ptr.hbm [resolvable:$true] %s19
      %s21 = sshll.u32 [#allocation3], 4
      %s22 = int_to_ptr.vmem [resolvable:$true] %s21
      %24 = dma.hbm_to_vmem [thread:$0]  %s20, 128, %s22, [#allocation4]
    $region5: #{tpu_custom_call.1} parent=1 // pred_fallthru
      _
    // Predicated region
    $region6: #{tpu_custom_call.1} parent=1 // pred_check
      _
    $region7: #{tpu_custom_call.1} parent=1 // pred_check_branch
      %26 = sbr.rel (0) target = $region9
    $region8: #{tpu_custom_call.1} parent=1 // pred_region
      %28 = vsyncadd [#allocation7], 0
      %s29 = sshll.u32 %s1, 4
      %s30 = int_to_ptr.hbm [resolvable:$true] %s29
      %s31 = sshll.u32 [#allocation6], 4
      %s32 = int_to_ptr.vmem [resolvable:$true] %s31
      %37 = dma.hbm_to_vmem [thread:$0]  %s30, 4096, %s32, [#allocation7], 256, 256, 16
    $region9: #{tpu_custom_call.1} parent=1 // pred_fallthru
      _
    // Predicated region
    $region10: #{tpu_custom_call.1} parent=1 // pred_check
      _
    $region11: #{tpu_custom_call.1} parent=1 // pred_check_branch
      %39 = sbr.rel (0) target = $region13
    $region12: #{tpu_custom_call.1} parent=1 // pred_region
      %41 = vsyncadd [#allocation7], 0
      %s43 = sshll.u32 %s2, 4
      %s44 = int_to_ptr.hbm [resolvable:$true] %s43
      %s45 = sshll.u32 [#allocation8], 4
      %s46 = int_to_ptr.vmem [resolvable:$true] %s45
      %48 = dma.hbm_to_vmem [thread:$0]  %s44, 64, %s46, [#allocation7]
    $region13: #{tpu_custom_call.1} parent=1 // pred_fallthru
      _
    // Predicated region
    $region14: #{tpu_custom_call.1} parent=1 // pred_check
      _
    $region15: #{tpu_custom_call.1} parent=1 // pred_check_branch
      %50 = sbr.rel (0) target = $region17
    $region16: #{tpu_custom_call.1} parent=1 // pred_region
      %52 = vsyncadd [#allocation10], 0
      %s53 = sshll.u32 %s3, 4
      %s54 = int_to_ptr.hbm [resolvable:$true] %s53
      %s55 = sshll.u32 [#allocation9], 4
      %s56 = int_to_ptr.vmem [resolvable:$true] %s55
      %61 = dma.hbm_to_vmem [thread:$0]  %s54, 4096, %s56, [#allocation10], 64, 64, 4
    $region17: #{tpu_custom_call.1} parent=1 // pred_fallthru
      _
    // Predicated region
    $region18: #{tpu_custom_call.1} parent=1 // pred_check
      _
    $region19: #{tpu_custom_call.1} parent=1 // pred_check_branch
      %63 = sbr.rel (0) target = $region21
    $region20: #{tpu_custom_call.1} parent=1 // pred_region
      _
    $region21: #{tpu_custom_call.1} parent=1 // pred_fallthru
      _
    // Predicated region
    $region22: #{tpu_custom_call.1} parent=1 // pred_check
      _
    $region23: #{tpu_custom_call.1} parent=1 // pred_check_branch
      %65 = sbr.rel (0) target = $region25
    $region24: #{tpu_custom_call.1} parent=1 // pred_region
      %67 = dma.done [#allocation4], 128
    $region25: #{tpu_custom_call.1} parent=1 // pred_fallthru
      _
    // Predicated region
    $region26: #{tpu_custom_call.1} parent=1 // pred_check
      _
    $region27: #{tpu_custom_call.1} parent=1 // pred_check_branch
      %69 = sbr.rel (0) target = $region29
    $region28: #{tpu_custom_call.1} parent=1 // pred_region
      %71 = dma.done [#allocation7], 4096
    $region29: #{tpu_custom_call.1} parent=1 // pred_fallthru
      _
    // Predicated region
    $region30: #{tpu_custom_call.1} parent=1 // pred_check
      _
    $region31: #{tpu_custom_call.1} parent=1 // pred_check_branch
      %73 = sbr.rel (0) target = $region33
    $region32: #{tpu_custom_call.1} parent=1 // pred_region
      %75 = dma.done [#allocation7], 64
    $region33: #{tpu_custom_call.1} parent=1 // pred_fallthru
      _
    // Predicated region
    $region34: #{tpu_custom_call.1} parent=1 // pred_check
      _
    $region35: #{tpu_custom_call.1} parent=1 // pred_check_branch
      %77 = sbr.rel (0) target = $region37
    $region36: #{tpu_custom_call.1} parent=1 // pred_region
      %79 = dma.done [#allocation10], 4096
    $region37: #{tpu_custom_call.1} parent=1 // pred_fallthru
      _
    %p80 = scmp.eq.s32.totalorder 0, 0
    // Predicated region
    $region38: #{tpu_custom_call.1} parent=1 // pred_check
      %p81 = pneg %p80
    $region39: #{tpu_custom_call.1} parent=1 // pred_check_branch
      %83 = sbr.rel (%p81) target = $region41
    $region40: #{tpu_custom_call.1} parent=1 // pred_region
      %84 = vst [vmem:[#allocation2] sm:$0xff] 0.0
      %85 = vst [vmem:[#allocation2 + $0x8] sm:$0xff] 0.0
      %86 = vst [vmem:[#allocation2 + $0x10] sm:$0xff] 0.0
      %87 = vst [vmem:[#allocation2 + $0x18] sm:$0xff] 0.0
    $region41: #{tpu_custom_call.1} parent=1 // pred_fallthru
      _
    %v88 = vld [vmem:[#allocation2] sm:$0xff]
    %v89 = vld [vmem:[#allocation2 + $0x8] sm:$0xff]
    %v90 = vld [vmem:[#allocation2 + $0x10] sm:$0xff]
    %v91 = vld [vmem:[#allocation2 + $0x18] sm:$0xff]
    %v92 = vld [vmem:[#allocation3] sm:$0xff]
    %v93 = vpack.c.bf16 %v92, %v92
    %v94 = vld [vmem:[#allocation6] sm:$0xff]
    %v95 = vld [vmem:[#allocation6 + $0x8] sm:$0xff]
    %v96 = vld [vmem:[#allocation6 + $0x10] sm:$0xff]
    %v97 = vld [vmem:[#allocation6 + $0x18] sm:$0xff]
    %v98 = vld [vmem:[#allocation6 + $0x20] sm:$0xff]
    %v99 = vld [vmem:[#allocation6 + $0x28] sm:$0xff]
    %v100 = vld [vmem:[#allocation6 + $0x30] sm:$0xff]
    %v101 = vld [vmem:[#allocation6 + $0x38] sm:$0xff]
    %v102 = vld [vmem:[#allocation6 + $0x40] sm:$0xff]
    %v103 = vld [vmem:[#allocation6 + $0x48] sm:$0xff]
    %v104 = vld [vmem:[#allocation6 + $0x50] sm:$0xff]
    %v105 = vld [vmem:[#allocation6 + $0x58] sm:$0xff]
    %v106 = vld [vmem:[#allocation6 + $0x60] sm:$0xff]
    %v107 = vld [vmem:[#allocation6 + $0x68] sm:$0xff]
    %v108 = vld [vmem:[#allocation6 + $0x70] sm:$0xff]
    %v109 = vld [vmem:[#allocation6 + $0x78] sm:$0xff]
    %v110 = vld [vmem:[#allocation6 + $0x80] sm:$0xff]
    %v111 = vld [vmem:[#allocation6 + $0x88] sm:$0xff]
    %v112 = vld [vmem:[#allocation6 + $0x90] sm:$0xff]
    %v113 = vld [vmem:[#allocation6 + $0x98] sm:$0xff]
    %v114 = vld [vmem:[#allocation6 + $0xa0] sm:$0xff]
    %v115 = vld [vmem:[#allocation6 + $0xa8] sm:$0xff]
    %v116 = vld [vmem:[#allocation6 + $0xb0] sm:$0xff]
    %v117 = vld [vmem:[#allocation6 + $0xb8] sm:$0xff]
    %v118 = vld [vmem:[#allocation6 + $0xc0] sm:$0xff]
    %v119 = vld [vmem:[#allocation6 + $0xc8] sm:$0xff]
    %v120 = vld [vmem:[#allocation6 + $0xd0] sm:$0xff]
    %v121 = vld [vmem:[#allocation6 + $0xd8] sm:$0xff]
    %v122 = vld [vmem:[#allocation6 + $0xe0] sm:$0xff]
    %v123 = vld [vmem:[#allocation6 + $0xe8] sm:$0xff]
    %v124 = vld [vmem:[#allocation6 + $0xf0] sm:$0xff]
    %v125 = vld [vmem:[#allocation6 + $0xf8] sm:$0xff]
    %v158 = vunpack.c.l.b16 %v94
    %v159 = vunpack.c.h.b16 %v94
    %v160 = vunpack.c.l.b16 %v95
    %v161 = vunpack.c.h.b16 %v95
    %v162 = vunpack.c.l.b16 %v96
    %v163 = vunpack.c.h.b16 %v96
    %v164 = vunpack.c.l.b16 %v97
    %v165 = vunpack.c.h.b16 %v97
    %v166 = vunpack.c.l.b16 %v98
    %v167 = vunpack.c.h.b16 %v98
    %v168 = vunpack.c.l.b16 %v99
    %v169 = vunpack.c.h.b16 %v99
    %v170 = vunpack.c.l.b16 %v100
    %v171 = vunpack.c.h.b16 %v100
    %v172 = vunpack.c.l.b16 %v101
    %v173 = vunpack.c.h.b16 %v101
    %v174 = vunpack.c.l.b16 %v102
    %v175 = vunpack.c.h.b16 %v102
    %v176 = vunpack.c.l.b16 %v103
    %v177 = vunpack.c.h.b16 %v103
    %v178 = vunpack.c.l.b16 %v104
    %v179 = vunpack.c.h.b16 %v104
    %v180 = vunpack.c.l.b16 %v105
    %v181 = vunpack.c.h.b16 %v105
    %v182 = vunpack.c.l.b16 %v106
    %v183 = vunpack.c.h.b16 %v106
    %v184 = vunpack.c.l.b16 %v107
    %v185 = vunpack.c.h.b16 %v107
    %v186 = vunpack.c.l.b16 %v108
    %v187 = vunpack.c.h.b16 %v108
    %v188 = vunpack.c.l.b16 %v109
    %v189 = vunpack.c.h.b16 %v109
    %v190 = vunpack.c.l.b16 %v110
    %v191 = vunpack.c.h.b16 %v110
    %v192 = vunpack.c.l.b16 %v111
    %v193 = vunpack.c.h.b16 %v111
    %v194 = vunpack.c.l.b16 %v112
    %v195 = vunpack.c.h.b16 %v112
    %v196 = vunpack.c.l.b16 %v113
    %v197 = vunpack.c.h.b16 %v113
    %v198 = vunpack.c.l.b16 %v114
    %v199 = vunpack.c.h.b16 %v114
    %v200 = vunpack.c.l.b16 %v115
    %v201 = vunpack.c.h.b16 %v115
    %v202 = vunpack.c.l.b16 %v116
    %v203 = vunpack.c.h.b16 %v116
    %v204 = vunpack.c.l.b16 %v117
    %v205 = vunpack.c.h.b16 %v117
    %v206 = vunpack.c.l.b16 %v118
    %v207 = vunpack.c.h.b16 %v118
    %v208 = vunpack.c.l.b16 %v119
    %v209 = vunpack.c.h.b16 %v119
    %v210 = vunpack.c.l.b16 %v120
    %v211 = vunpack.c.h.b16 %v120
    %v212 = vunpack.c.l.b16 %v121
    %v213 = vunpack.c.h.b16 %v121
    %v214 = vunpack.c.l.b16 %v122
    %v215 = vunpack.c.h.b16 %v122
    %v216 = vunpack.c.l.b16 %v123
    %v217 = vunpack.c.h.b16 %v123
    %v218 = vunpack.c.l.b16 %v124
    %v219 = vunpack.c.h.b16 %v124
    %v220 = vunpack.c.l.b16 %v125
    %v221 = vunpack.c.h.b16 %v125
    %v222 = vpack.c.b16 %v162, %v158
    %v223 = vpack.c.b16 %v163, %v159
    %v224 = vpack.c.b16 %v164, %v160
    %v225 = vpack.c.b16 %v165, %v161
    %v226 = vpack.c.b16 %v170, %v166
    %v227 = vpack.c.b16 %v171, %v167
    %v228 = vpack.c.b16 %v172, %v168
    %v229 = vpack.c.b16 %v173, %v169
    %v230 = vpack.c.b16 %v178, %v174
    %v231 = vpack.c.b16 %v179, %v175
    %v232 = vpack.c.b16 %v180, %v176
    %v233 = vpack.c.b16 %v181, %v177
    %v234 = vpack.c.b16 %v186, %v182
    %v235 = vpack.c.b16 %v187, %v183
    %v236 = vpack.c.b16 %v188, %v184
    %v237 = vpack.c.b16 %v189, %v185
    %v238 = vpack.c.b16 %v194, %v190
    %v239 = vpack.c.b16 %v195, %v191
    %v240 = vpack.c.b16 %v196, %v192
    %v241 = vpack.c.b16 %v197, %v193
    %v242 = vpack.c.b16 %v202, %v198
    %v243 = vpack.c.b16 %v203, %v199
    %v244 = vpack.c.b16 %v204, %v200
    %v245 = vpack.c.b16 %v205, %v201
    %v246 = vpack.c.b16 %v210, %v206
    %v247 = vpack.c.b16 %v211, %v207
    %v248 = vpack.c.b16 %v212, %v208
    %v249 = vpack.c.b16 %v213, %v209
    %v250 = vpack.c.b16 %v218, %v214
    %v251 = vpack.c.b16 %v219, %v215
    %v252 = vpack.c.b16 %v220, %v216
    %v253 = vpack.c.b16 %v221, %v217
    %286 = vmatpush.bf16.msra.mxu0 %v250
    %287 = vmatpush.bf16.msra.mxu0 %v246
    %288 = vmatpush.bf16.msra.mxu0 %v242
    %289 = vmatpush.bf16.msra.mxu0 %v238
    %290 = vmatpush.bf16.msra.mxu0 %v234
    %291 = vmatpush.bf16.msra.mxu0 %v230
    %292 = vmatpush.bf16.msra.mxu0 %v226
    %293 = vmatpush.bf16.msra.mxu0 %v222
    %294 = vmatmul.bf16.gmra.mxu0 %v93
    %v295 = vpop.f32.mrf.mxu0
    %v296 = vadd.f32 0.0, %v295
    %v297 = vpop.f32.mrf.mxu0
    %298 = vdwg.mxu0
    %299 = vmatpush.bf16.msra.mxu0 %v251
    %300 = vmatpush.bf16.msra.mxu0 %v247
    %301 = vmatpush.bf16.msra.mxu0 %v243
    %302 = vmatpush.bf16.msra.mxu0 %v239
    %303 = vmatpush.bf16.msra.mxu0 %v235
    %304 = vmatpush.bf16.msra.mxu0 %v231
    %305 = vmatpush.bf16.msra.mxu0 %v227
    %306 = vmatpush.bf16.msra.mxu0 %v223
    %307 = vmatmul.bf16.gmra.mxu0 %v93
    %v308 = vpop.f32.mrf.mxu0
    %v309 = vadd.f32 0.0, %v308
    %v310 = vpop.f32.mrf.mxu0
    %311 = vdwg.mxu0
    %312 = vmatpush.bf16.msra.mxu0 %v252
    %313 = vmatpush.bf16.msra.mxu0 %v248
    %314 = vmatpush.bf16.msra.mxu0 %v244
    %315 = vmatpush.bf16.msra.mxu0 %v240
    %316 = vmatpush.bf16.msra.mxu0 %v236
    %317 = vmatpush.bf16.msra.mxu0 %v232
    %318 = vmatpush.bf16.msra.mxu0 %v228
    %319 = vmatpush.bf16.msra.mxu0 %v224
    %320 = vmatmul.bf16.gmra.mxu0 %v93
    %v321 = vpop.f32.mrf.mxu0
    %v322 = vadd.f32 0.0, %v321
    %v323 = vpop.f32.mrf.mxu0
    %324 = vdwg.mxu0
    %325 = vmatpush.bf16.msra.mxu0 %v253
    %326 = vmatpush.bf16.msra.mxu0 %v249
    %327 = vmatpush.bf16.msra.mxu0 %v245
    %328 = vmatpush.bf16.msra.mxu0 %v241
    %329 = vmatpush.bf16.msra.mxu0 %v237
    %330 = vmatpush.bf16.msra.mxu0 %v233
    %331 = vmatpush.bf16.msra.mxu0 %v229
    %332 = vmatpush.bf16.msra.mxu0 %v225
    %333 = vmatmul.bf16.gmra.mxu0 %v93
    %v334 = vpop.f32.mrf.mxu0
    %v335 = vadd.f32 0.0, %v334
    %v336 = vpop.f32.mrf.mxu0
    %337 = vdwg.mxu0
    %v338 = vadd.f32 %v88, %v296
    %v339 = vadd.f32 %v89, %v309
    %v340 = vadd.f32 %v90, %v322
    %v341 = vadd.f32 %v91, %v335
    %342 = vst [vmem:[#allocation2] sm:$0xff] %v338
    %343 = vst [vmem:[#allocation2 + $0x8] sm:$0xff] %v339
    %344 = vst [vmem:[#allocation2 + $0x10] sm:$0xff] %v340
    %345 = vst [vmem:[#allocation2 + $0x18] sm:$0xff] %v341
    // Predicated region
    $region42: #{tpu_custom_call.1} parent=1 // pred_check
      %p346 = pneg %p80
    $region43: #{tpu_custom_call.1} parent=1 // pred_check_branch
      %348 = sbr.rel (%p346) target = $region45
    $region44: #{tpu_custom_call.1} parent=1 // pred_region
      %v349 = vld [vmem:[#allocation2] sm:$0xff]
      %v350 = vld [vmem:[#allocation2 + $0x8] sm:$0xff]
      %v351 = vld [vmem:[#allocation2 + $0x10] sm:$0xff]
      %v352 = vld [vmem:[#allocation2 + $0x18] sm:$0xff]
      %v353 = vld [vmem:[#allocation8] sm:$0xf]
      %v355 = vperm.slane %v353, 0
      %v356 = vperm.slane %v353, 1
      %v357 = vperm.slane %v353, 2
      %v358 = vperm.slane %v353, 3
      %v363 = vadd.f32 %v349, %v355
      %v364 = vadd.f32 %v350, %v356
      %v365 = vadd.f32 %v351, %v357
      %v366 = vadd.f32 %v352, %v358
      %v367 = vmax.f32 %v363, 0.0
      %v368 = vmax.f32 %v364, 0.0
      %v369 = vmax.f32 %v365, 0.0
      %v370 = vmax.f32 %v366, 0.0
      %v371 = vpack.c.bf16 %v367, %v367
      %v372 = vpack.c.bf16 %v368, %v368
      %v373 = vpack.c.bf16 %v369, %v369
      %v374 = vpack.c.bf16 %v370, %v370
      %v375 = vld [vmem:[#allocation9] sm:$0xf]
      %v376 = vld [vmem:[#allocation9 + $0x4] sm:$0xf]
      %v377 = vld [vmem:[#allocation9 + $0x8] sm:$0xf]
      %v378 = vld [vmem:[#allocation9 + $0xc] sm:$0xf]
      %v379 = vld [vmem:[#allocation9 + $0x10] sm:$0xf]
      %v380 = vld [vmem:[#allocation9 + $0x14] sm:$0xf]
      %v381 = vld [vmem:[#allocation9 + $0x18] sm:$0xf]
      %v382 = vld [vmem:[#allocation9 + $0x1c] sm:$0xf]
      %v383 = vld [vmem:[#allocation9 + $0x20] sm:$0xf]
      %v384 = vld [vmem:[#allocation9 + $0x24] sm:$0xf]
      %v385 = vld [vmem:[#allocation9 + $0x28] sm:$0xf]
      %v386 = vld [vmem:[#allocation9 + $0x2c] sm:$0xf]
      %v387 = vld [vmem:[#allocation9 + $0x30] sm:$0xf]
      %v388 = vld [vmem:[#allocation9 + $0x34] sm:$0xf]
      %v389 = vld [vmem:[#allocation9 + $0x38] sm:$0xf]
      %v390 = vld [vmem:[#allocation9 + $0x3c] sm:$0xf]
      %v391 = vld [vmem:[#allocation9 + $0x40] sm:$0xf]
      %v392 = vld [vmem:[#allocation9 + $0x44] sm:$0xf]
      %v393 = vld [vmem:[#allocation9 + $0x48] sm:$0xf]
      %v394 = vld [vmem:[#allocation9 + $0x4c] sm:$0xf]
      %v395 = vld [vmem:[#allocation9 + $0x50] sm:$0xf]
      %v396 = vld [vmem:[#allocation9 + $0x54] sm:$0xf]
      %v397 = vld [vmem:[#allocation9 + $0x58] sm:$0xf]
      %v398 = vld [vmem:[#allocation9 + $0x5c] sm:$0xf]
      %v399 = vld [vmem:[#allocation9 + $0x60] sm:$0xf]
      %v400 = vld [vmem:[#allocation9 + $0x64] sm:$0xf]
      %v401 = vld [vmem:[#allocation9 + $0x68] sm:$0xf]
      %v402 = vld [vmem:[#allocation9 + $0x6c] sm:$0xf]
      %v403 = vld [vmem:[#allocation9 + $0x70] sm:$0xf]
      %v404 = vld [vmem:[#allocation9 + $0x74] sm:$0xf]
      %v405 = vld [vmem:[#allocation9 + $0x78] sm:$0xf]
      %v406 = vld [vmem:[#allocation9 + $0x7c] sm:$0xf]
      %v407 = vld [vmem:[#allocation9 + $0x80] sm:$0xf]
      %v408 = vld [vmem:[#allocation9 + $0x84] sm:$0xf]
      %v409 = vld [vmem:[#allocation9 + $0x88] sm:$0xf]
      %v410 = vld [vmem:[#allocation9 + $0x8c] sm:$0xf]
      %v411 = vld [vmem:[#allocation9 + $0x90] sm:$0xf]
      %v412 = vld [vmem:[#allocation9 + $0x94] sm:$0xf]
      %v413 = vld [vmem:[#allocation9 + $0x98] sm:$0xf]
      %v414 = vld [vmem:[#allocation9 + $0x9c] sm:$0xf]
      %v415 = vld [vmem:[#allocation9 + $0xa0] sm:$0xf]
      %v416 = vld [vmem:[#allocation9 + $0xa4] sm:$0xf]
      %v417 = vld [vmem:[#allocation9 + $0xa8] sm:$0xf]
      %v418 = vld [vmem:[#allocation9 + $0xac] sm:$0xf]
      %v419 = vld [vmem:[#allocation9 + $0xb0] sm:$0xf]
      %v420 = vld [vmem:[#allocation9 + $0xb4] sm:$0xf]
      %v421 = vld [vmem:[#allocation9 + $0xb8] sm:$0xf]
      %v422 = vld [vmem:[#allocation9 + $0xbc] sm:$0xf]
      %v423 = vld [vmem:[#allocation9 + $0xc0] sm:$0xf]
      %v424 = vld [vmem:[#allocation9 + $0xc4] sm:$0xf]
      %v425 = vld [vmem:[#allocation9 + $0xc8] sm:$0xf]
      %v426 = vld [vmem:[#allocation9 + $0xcc] sm:$0xf]
      %v427 = vld [vmem:[#allocation9 + $0xd0] sm:$0xf]
      %v428 = vld [vmem:[#allocation9 + $0xd4] sm:$0xf]
      %v429 = vld [vmem:[#allocation9 + $0xd8] sm:$0xf]
      %v430 = vld [vmem:[#allocation9 + $0xdc] sm:$0xf]
      %v431 = vld [vmem:[#allocation9 + $0xe0] sm:$0xf]
      %v432 = vld [vmem:[#allocation9 + $0xe4] sm:$0xf]
      %v433 = vld [vmem:[#allocation9 + $0xe8] sm:$0xf]
      %v434 = vld [vmem:[#allocation9 + $0xec] sm:$0xf]
      %v435 = vld [vmem:[#allocation9 + $0xf0] sm:$0xf]
      %v436 = vld [vmem:[#allocation9 + $0xf4] sm:$0xf]
      %v437 = vld [vmem:[#allocation9 + $0xf8] sm:$0xf]
      %v438 = vld [vmem:[#allocation9 + $0xfc] sm:$0xf]
      %v439 = vld [vmem:[%s4] sm:$0x1]
      %v441 = vperm.slane %v439, 0
      %v507 = vunpack.c.l.b16 %v375
      %v508 = vunpack.c.l.b16 %v376
      %v509 = vunpack.c.l.b16 %v377
      %v510 = vunpack.c.l.b16 %v378
      %v511 = vunpack.c.l.b16 %v379
      %v512 = vunpack.c.l.b16 %v380
      %v513 = vunpack.c.l.b16 %v381
      %v514 = vunpack.c.l.b16 %v382
      %v515 = vunpack.c.l.b16 %v383
      %v516 = vunpack.c.l.b16 %v384
      %v517 = vunpack.c.l.b16 %v385
      %v518 = vunpack.c.l.b16 %v386
      %v519 = vunpack.c.l.b16 %v387
      %v520 = vunpack.c.l.b16 %v388
      %v521 = vunpack.c.l.b16 %v389
      %v522 = vunpack.c.l.b16 %v390
      %v523 = vunpack.c.l.b16 %v391
      %v524 = vunpack.c.l.b16 %v392
      %v525 = vunpack.c.l.b16 %v393
      %v526 = vunpack.c.l.b16 %v394
      %v527 = vunpack.c.l.b16 %v395
      %v528 = vunpack.c.l.b16 %v396
      %v529 = vunpack.c.l.b16 %v397
      %v530 = vunpack.c.l.b16 %v398
      %v531 = vunpack.c.l.b16 %v399
      %v532 = vunpack.c.l.b16 %v400
      %v533 = vunpack.c.l.b16 %v401
      %v534 = vunpack.c.l.b16 %v402
      %v535 = vunpack.c.l.b16 %v403
      %v536 = vunpack.c.l.b16 %v404
      %v537 = vunpack.c.l.b16 %v405
      %v538 = vunpack.c.l.b16 %v406
      %v539 = vunpack.c.l.b16 %v407
      %v540 = vunpack.c.l.b16 %v408
      %v541 = vunpack.c.l.b16 %v409
      %v542 = vunpack.c.l.b16 %v410
      %v543 = vunpack.c.l.b16 %v411
      %v544 = vunpack.c.l.b16 %v412
      %v545 = vunpack.c.l.b16 %v413
      %v546 = vunpack.c.l.b16 %v414
      %v547 = vunpack.c.l.b16 %v415
      %v548 = vunpack.c.l.b16 %v416
      %v549 = vunpack.c.l.b16 %v417
      %v550 = vunpack.c.l.b16 %v418
      %v551 = vunpack.c.l.b16 %v419
      %v552 = vunpack.c.l.b16 %v420
      %v553 = vunpack.c.l.b16 %v421
      %v554 = vunpack.c.l.b16 %v422
      %v555 = vunpack.c.l.b16 %v423
      %v556 = vunpack.c.l.b16 %v424
      %v557 = vunpack.c.l.b16 %v425
      %v558 = vunpack.c.l.b16 %v426
      %v559 = vunpack.c.l.b16 %v427
      %v560 = vunpack.c.l.b16 %v428
      %v561 = vunpack.c.l.b16 %v429
      %v562 = vunpack.c.l.b16 %v430
      %v563 = vunpack.c.l.b16 %v431
      %v564 = vunpack.c.l.b16 %v432
      %v565 = vunpack.c.l.b16 %v433
      %v566 = vunpack.c.l.b16 %v434
      %v567 = vunpack.c.l.b16 %v435
      %v568 = vunpack.c.l.b16 %v436
      %v569 = vunpack.c.l.b16 %v437
      %v570 = vunpack.c.l.b16 %v438
      %v571 = vpack.c.b16 %v508, %v507
      %v572 = vpack.c.b16 %v510, %v509
      %v573 = vpack.c.b16 %v512, %v511
      %v574 = vpack.c.b16 %v514, %v513
      %v575 = vpack.c.b16 %v516, %v515
      %v576 = vpack.c.b16 %v518, %v517
      %v577 = vpack.c.b16 %v520, %v519
      %v578 = vpack.c.b16 %v522, %v521
      %v579 = vpack.c.b16 %v524, %v523
      %v580 = vpack.c.b16 %v526, %v525
      %v581 = vpack.c.b16 %v528, %v527
      %v582 = vpack.c.b16 %v530, %v529
      %v583 = vpack.c.b16 %v532, %v531
      %v584 = vpack.c.b16 %v534, %v533
      %v585 = vpack.c.b16 %v536, %v535
      %v586 = vpack.c.b16 %v538, %v537
      %v587 = vpack.c.b16 %v540, %v539
      %v588 = vpack.c.b16 %v542, %v541
      %v589 = vpack.c.b16 %v544, %v543
      %v590 = vpack.c.b16 %v546, %v545
      %v591 = vpack.c.b16 %v548, %v547
      %v592 = vpack.c.b16 %v550, %v549
      %v593 = vpack.c.b16 %v552, %v551
      %v594 = vpack.c.b16 %v554, %v553
      %v595 = vpack.c.b16 %v556, %v555
      %v596 = vpack.c.b16 %v558, %v557
      %v597 = vpack.c.b16 %v560, %v559
      %v598 = vpack.c.b16 %v562, %v561
      %v599 = vpack.c.b16 %v564, %v563
      %v600 = vpack.c.b16 %v566, %v565
      %v601 = vpack.c.b16 %v568, %v567
      %v602 = vpack.c.b16 %v570, %v569
      %635 = vmatpush.bf16.msra.mxu0 %v578
      %636 = vmatpush.bf16.msra.mxu0 %v577
      %637 = vmatpush.bf16.msra.mxu0 %v576
      %638 = vmatpush.bf16.msra.mxu0 %v575
      %639 = vmatpush.bf16.msra.mxu0 %v574
      %640 = vmatpush.bf16.msra.mxu0 %v573
      %641 = vmatpush.bf16.msra.mxu0 %v572
      %642 = vmatpush.bf16.msra.mxu0 %v571
      %643 = vmatmul.bf16.gmra.mxu0 %v371
      %v644 = vpop.f32.mrf.mxu0
      %v645 = vadd.f32 %v441, %v644
      %v646 = vpop.f32.mrf.mxu0
      %647 = vdwg.mxu0
      %648 = vmatpush.bf16.msra.mxu0 %v586
      %649 = vmatpush.bf16.msra.mxu0 %v585
      %650 = vmatpush.bf16.msra.mxu0 %v584
      %651 = vmatpush.bf16.msra.mxu0 %v583
      %652 = vmatpush.bf16.msra.mxu0 %v582
      %653 = vmatpush.bf16.msra.mxu0 %v581
      %654 = vmatpush.bf16.msra.mxu0 %v580
      %655 = vmatpush.bf16.msra.mxu0 %v579
      %656 = vmatmul.bf16.gmra.mxu0 %v372
      %v657 = vpop.f32.mrf.mxu0
      %v658 = vadd.f32 %v645, %v657
      %v659 = vpop.f32.mrf.mxu0
      %660 = vdwg.mxu0
      %661 = vmatpush.bf16.msra.mxu0 %v594
      %662 = vmatpush.bf16.msra.mxu0 %v593
      %663 = vmatpush.bf16.msra.mxu0 %v592
      %664 = vmatpush.bf16.msra.mxu0 %v591
      %665 = vmatpush.bf16.msra.mxu0 %v590
      %666 = vmatpush.bf16.msra.mxu0 %v589
      %667 = vmatpush.bf16.msra.mxu0 %v588
      %668 = vmatpush.bf16.msra.mxu0 %v587
      %669 = vmatmul.bf16.gmra.mxu0 %v373
      %v670 = vpop.f32.mrf.mxu0
      %v671 = vadd.f32 %v658, %v670
      %v672 = vpop.f32.mrf.mxu0
      %673 = vdwg.mxu0
      %674 = vmatpush.bf16.msra.mxu0 %v602
      %675 = vmatpush.bf16.msra.mxu0 %v601
      %676 = vmatpush.bf16.msra.mxu0 %v600
      %677 = vmatpush.bf16.msra.mxu0 %v599
      %678 = vmatpush.bf16.msra.mxu0 %v598
      %679 = vmatpush.bf16.msra.mxu0 %v597
      %680 = vmatpush.bf16.msra.mxu0 %v596
      %681 = vmatpush.bf16.msra.mxu0 %v595
      %682 = vmatmul.bf16.gmra.mxu0 %v374
      %v683 = vpop.f32.mrf.mxu0
      %v684 = vadd.f32 %v671, %v683
      %v685 = vpop.f32.mrf.mxu0
      %686 = vdwg.mxu0
      %v687 = vpack.c.bf16 %v684, %v684
      %688 = vst [vmem:[#allocation11] sm:$0xf] %v687
    $region45: #{tpu_custom_call.1} parent=1 // pred_fallthru
      _
    // Predicated region
    $region46: #{tpu_custom_call.1} parent=1 // pred_check
      _
    $region47: #{tpu_custom_call.1} parent=1 // pred_check_branch
      %690 = sbr.rel (0) target = $region49
    $region48: #{tpu_custom_call.1} parent=1 // pred_region
      %692 = vsyncadd [#allocation5], 0
      %s694 = sshll.u32 [#allocation11], 4
      %s695 = int_to_ptr.vmem [resolvable:$true] %s694
      %s696 = sshll.u32 %s5, 4
      %s697 = int_to_ptr.hbm [resolvable:$true] %s696
      %699 = dma.vmem_to_hbm [thread:$0]  %s695, 64, %s697, [#allocation5]
    $region49: #{tpu_custom_call.1} parent=1 // pred_fallthru
      _
    // Predicated region
    $region50: #{tpu_custom_call.1} parent=1 // pred_check
      _
    $region51: #{tpu_custom_call.1} parent=1 // pred_check_branch
      %701 = sbr.rel (0) target = $region53
    $region52: #{tpu_custom_call.1} parent=1 // pred_region
      %703 = dma.done [#allocation5], 64
    $region53: #{tpu_custom_call.1} parent=1 // pred_fallthru
      _
    %704 = vsyncpa [#allocation4], 1
    %705 = vsyncpa [#allocation7], 1
    %706 = vsyncpa [#allocation10], 1
    %707 = vsyncpa [#allocation5], 1

// kernel: tpu_custom_call.1
$region0: #{tpu_custom_call.1}
  #allocation0 [shape = 'u32[]', space=smem, size = 0x4, offset = 0x4, fixed_abs, tag = 'smem constant byte address 0x4 - core index']
  #allocation1 [shape = 'u32[72,128]{1,0:T(1,128)}', space=vmem, size = 0x9000, scoped, tag = 'internal scratch']
  #allocation2 [shape = 'f32[8,512]{1,0:T(8,128)}', space=vmem, size = 0x4000, scoped, tag = 'scratch operand']
  %s0 = inlined_call_operand.hbm [shape: f32[8,128], index: 0, kind: input, shape index: {}]
  %s1 = inlined_call_operand.hbm [shape: bf16[128,512], index: 1, kind: input, shape index: {}]
  %s2 = inlined_call_operand.hbm [shape: f32[1,512], index: 2, kind: input, shape index: {}]
  %s3 = inlined_call_operand.hbm [shape: bf16[512,128], index: 3, kind: input, shape index: {}]
  %s4 = inlined_call_operand.vmem [shape: f32[1,128], index: 4, kind: input, shape index: {}]
  %s5 = inlined_call_operand.hbm [shape: bf16[8,128], index: 5, kind: output, shape index: {}]
  %s6 = sld [smem:[#allocation0]]
  $region54: #{tpu_custom_call.1} parent=0
    _
  %s8 = ssub.s32 1, %s6
  %s9 = scalar_select 0, %s8, %s6
  $region1: #{tpu_custom_call.1} parent=0
    #allocation3 [shape = 'u8[4096]{0}', space=vmem, size = 0x1000, scoped, tag = 'input window, operand 0, single buffered']
    #allocation4 [shape = 's32[1]{0}', space=sflag, size = 0x4, scoped, tag = 'scoped memory for tpu_custom_call.1']
    #allocation5 [shape = 's32[1]{0}', space=sflag, size = 0x4, scoped, tag = 'scoped memory for tpu_custom_call.1']
    #allocation6 [shape = 'u8[131072]{0}', space=vmem, size = 0x20000, scoped, tag = 'input window, operand 1, single buffered']
    #allocation7 [shape = 's32[1]{0}', space=sflag, size = 0x4, scoped, tag = 'scoped memory for tpu_custom_call.1']
    #allocation8 [shape = 'u8[2048]{0}', space=vmem, size = 0x800, scoped, tag = 'input window, operand 2, single buffered']
    #allocation9 [shape = 'u8[131072]{0}', space=vmem, size = 0x20000, scoped, tag = 'input window, operand 3, single buffered']
    #allocation10 [shape = 's32[1]{0}', space=sflag, size = 0x4, scoped, tag = 'scoped memory for tpu_custom_call.1']
    #allocation11 [shape = 'u8[2048]{0}', space=vmem, size = 0x800, scoped, tag = 'output window, operand 0, single buffered']
    %10 = vsyncpa [#allocation4], 0
    %11 = vsyncpa [#allocation7], 0
    %12 = vsyncpa [#allocation10], 0
    %13 = vsyncpa [#allocation5], 0
    // Predicated region
    $region2: #{tpu_custom_call.1} parent=1 // pred_check
      _
    $region3: #{tpu_custom_call.1} parent=1 // pred_check_branch
      %15 = sbr.rel (0) target = $region5
    $region4: #{tpu_custom_call.1} parent=1 // pred_region
      %17 = vsyncadd [#allocation4], 0
      %s19 = sshll.u32 %s0, 4
      %s20 = int_to_ptr.hbm [resolvable:$true] %s19
      %s21 = sshll.u32 [#allocation3], 4
      %s22 = int_to_ptr.vmem [resolvable:$true] %s21
      %24 = dma.hbm_to_vmem [thread:$0]  %s20, 128, %s22, [#allocation4]
    $region5: #{tpu_custom_call.1} parent=1 // pred_fallthru
      _
    // Predicated region
    $region6: #{tpu_custom_call.1} parent=1 // pred_check
      _
    $region7: #{tpu_custom_call.1} parent=1 // pred_check_branch
      %26 = sbr.rel (0) target = $region9
    $region8: #{tpu_custom_call.1} parent=1 // pred_region
      %28 = vsyncadd [#allocation7], 0
      %s29 = sshll.u32 %s1, 4
      %s30 = int_to_ptr.hbm [resolvable:$true] %s29
      %s31 = sshll.u32 [#allocation6], 4
      %s32 = int_to_ptr.vmem [resolvable:$true] %s31
      %37 = dma.hbm_to_vmem [thread:$0]  %s30, 4096, %s32, [#allocation7], 256, 256, 16
    $region9: #{tpu_custom_call.1} parent=1 // pred_fallthru
      _
    // Predicated region
    $region10: #{tpu_custom_call.1} parent=1 // pred_check
      _
    $region11: #{tpu_custom_call.1} parent=1 // pred_check_branch
      %39 = sbr.rel (0) target = $region13
    $region12: #{tpu_custom_call.1} parent=1 // pred_region
      %41 = vsyncadd [#allocation7], 0
      %s43 = sshll.u32 %s2, 4
      %s44 = int_to_ptr.hbm [resolvable:$true] %s43
      %s45 = sshll.u32 [#allocation8], 4
      %s46 = int_to_ptr.vmem [resolvable:$true] %s45
      %48 = dma.hbm_to_vmem [thread:$0]  %s44, 64, %s46, [#allocation7]
    $region13: #{tpu_custom_call.1} parent=1 // pred_fallthru
      _
    // Predicated region
    $region14: #{tpu_custom_call.1} parent=1 // pred_check
      _
    $region15: #{tpu_custom_call.1} parent=1 // pred_check_branch
      %50 = sbr.rel (0) target = $region17
    $region16: #{tpu_custom_call.1} parent=1 // pred_region
      %52 = vsyncadd [#allocation10], 0
      %s53 = sshll.u32 %s3, 4
      %s54 = int_to_ptr.hbm [resolvable:$true] %s53
      %s55 = sshll.u32 [#allocation9], 4
      %s56 = int_to_ptr.vmem [resolvable:$true] %s55
      %61 = dma.hbm_to_vmem [thread:$0]  %s54, 4096, %s56, [#allocation10], 64, 64, 4
    $region17: #{tpu_custom_call.1} parent=1 // pred_fallthru
      _
    // Predicated region
    $region18: #{tpu_custom_call.1} parent=1 // pred_check
      _
    $region19: #{tpu_custom_call.1} parent=1 // pred_check_branch
      %63 = sbr.rel (0) target = $region21
    $region20: #{tpu_custom_call.1} parent=1 // pred_region
      _
    $region21: #{tpu_custom_call.1} parent=1 // pred_fallthru
      _
    // Predicated region
    $region22: #{tpu_custom_call.1} parent=1 // pred_check
      _
    $region23: #{tpu_custom_call.1} parent=1 // pred_check_branch
      %65 = sbr.rel (0) target = $region25
    $region24: #{tpu_custom_call.1} parent=1 // pred_region
      %67 = dma.done [#allocation4], 128
    $region25: #{tpu_custom_call.1} parent=1 // pred_fallthru
      _
    // Predicated region
    $region26: #{tpu_custom_call.1} parent=1 // pred_check
      _
    $region27: #{tpu_custom_call.1} parent=1 // pred_check_branch
      %69 = sbr.rel (0) target = $region29
    $region28: #{tpu_custom_call.1} parent=1 // pred_region
      %71 = dma.done [#allocation7], 4096
    $region29: #{tpu_custom_call.1} parent=1 // pred_fallthru
      _
    // Predicated region
    $region30: #{tpu_custom_call.1} parent=1 // pred_check
      _
    $region31: #{tpu_custom_call.1} parent=1 // pred_check_branch
      %73 = sbr.rel (0) target = $region33
    $region32: #{tpu_custom_call.1} parent=1 // pred_region
      %75 = dma.done [#allocation7], 64
    $region33: #{tpu_custom_call.1} parent=1 // pred_fallthru
      _
    // Predicated region
    $region34: #{tpu_custom_call.1} parent=1 // pred_check
      _
    $region35: #{tpu_custom_call.1} parent=1 // pred_check_branch
      %77 = sbr.rel (0) target = $region37
    $region36: #{tpu_custom_call.1} parent=1 // pred_region
      %79 = dma.done [#allocation10], 4096
    $region37: #{tpu_custom_call.1} parent=1 // pred_fallthru
      _
    %p80 = scmp.eq.s32.totalorder 0, 0
    // Predicated region
    $region38: #{tpu_custom_call.1} parent=1 // pred_check
      %p81 = pneg %p80
    $region39: #{tpu_custom_call.1} parent=1 // pred_check_branch
      %83 = sbr.rel (%p81) target = $region41
    $region40: #{tpu_custom_call.1} parent=1 // pred_region
      %84 = vst [vmem:[#allocation2] sm:$0xff] 0.0
      %85 = vst [vmem:[#allocation2 + $0x8] sm:$0xff] 0.0
      %86 = vst [vmem:[#allocation2 + $0x10] sm:$0xff] 0.0
      %87 = vst [vmem:[#allocation2 + $0x18] sm:$0xff] 0.0
    $region41: #{tpu_custom_call.1} parent=1 // pred_fallthru
      _
    %v88 = vld [vmem:[#allocation2] sm:$0xff]
    %v89 = vld [vmem:[#allocation2 + $0x8] sm:$0xff]
    %v90 = vld [vmem:[#allocation2 + $0x10] sm:$0xff]
    %v91 = vld [vmem:[#allocation2 + $0x18] sm:$0xff]
    %v92 = vld [vmem:[#allocation3] sm:$0xff]
    %v93 = vpack.c.bf16 %v92, %v92
    %v94 = vld [vmem:[#allocation6] sm:$0xff]
    %v95 = vld [vmem:[#allocation6 + $0x8] sm:$0xff]
    %v96 = vld [vmem:[#allocation6 + $0x10] sm:$0xff]
    %v97 = vld [vmem:[#allocation6 + $0x18] sm:$0xff]
    %v98 = vld [vmem:[#allocation6 + $0x20] sm:$0xff]
    %v99 = vld [vmem:[#allocation6 + $0x28] sm:$0xff]
    %v100 = vld [vmem:[#allocation6 + $0x30] sm:$0xff]
    %v101 = vld [vmem:[#allocation6 + $0x38] sm:$0xff]
    %v102 = vld [vmem:[#allocation6 + $0x40] sm:$0xff]
    %v103 = vld [vmem:[#allocation6 + $0x48] sm:$0xff]
    %v104 = vld [vmem:[#allocation6 + $0x50] sm:$0xff]
    %v105 = vld [vmem:[#allocation6 + $0x58] sm:$0xff]
    %v106 = vld [vmem:[#allocation6 + $0x60] sm:$0xff]
    %v107 = vld [vmem:[#allocation6 + $0x68] sm:$0xff]
    %v108 = vld [vmem:[#allocation6 + $0x70] sm:$0xff]
    %v109 = vld [vmem:[#allocation6 + $0x78] sm:$0xff]
    %v110 = vld [vmem:[#allocation6 + $0x80] sm:$0xff]
    %v111 = vld [vmem:[#allocation6 + $0x88] sm:$0xff]
    %v112 = vld [vmem:[#allocation6 + $0x90] sm:$0xff]
    %v113 = vld [vmem:[#allocation6 + $0x98] sm:$0xff]
    %v114 = vld [vmem:[#allocation6 + $0xa0] sm:$0xff]
    %v115 = vld [vmem:[#allocation6 + $0xa8] sm:$0xff]
    %v116 = vld [vmem:[#allocation6 + $0xb0] sm:$0xff]
    %v117 = vld [vmem:[#allocation6 + $0xb8] sm:$0xff]
    %v118 = vld [vmem:[#allocation6 + $0xc0] sm:$0xff]
    %v119 = vld [vmem:[#allocation6 + $0xc8] sm:$0xff]
    %v120 = vld [vmem:[#allocation6 + $0xd0] sm:$0xff]
    %v121 = vld [vmem:[#allocation6 + $0xd8] sm:$0xff]
    %v122 = vld [vmem:[#allocation6 + $0xe0] sm:$0xff]
    %v123 = vld [vmem:[#allocation6 + $0xe8] sm:$0xff]
    %v124 = vld [vmem:[#allocation6 + $0xf0] sm:$0xff]
    %v125 = vld [vmem:[#allocation6 + $0xf8] sm:$0xff]
    %v158 = vunpack.c.l.b16 %v94
    %v159 = vunpack.c.h.b16 %v94
    %v160 = vunpack.c.l.b16 %v95
    %v161 = vunpack.c.h.b16 %v95
    %v162 = vunpack.c.l.b16 %v96
    %v163 = vunpack.c.h.b16 %v96
    %v164 = vunpack.c.l.b16 %v97
    %v165 = vunpack.c.h.b16 %v97
    %v166 = vunpack.c.l.b16 %v98
    %v167 = vunpack.c.h.b16 %v98
    %v168 = vunpack.c.l.b16 %v99
    %v169 = vunpack.c.h.b16 %v99
    %v170 = vunpack.c.l.b16 %v100
    %v171 = vunpack.c.h.b16 %v100
    %v172 = vunpack.c.l.b16 %v101
    %v173 = vunpack.c.h.b16 %v101
    %v174 = vunpack.c.l.b16 %v102
    %v175 = vunpack.c.h.b16 %v102
    %v176 = vunpack.c.l.b16 %v103
    %v177 = vunpack.c.h.b16 %v103
    %v178 = vunpack.c.l.b16 %v104
    %v179 = vunpack.c.h.b16 %v104
    %v180 = vunpack.c.l.b16 %v105
    %v181 = vunpack.c.h.b16 %v105
    %v182 = vunpack.c.l.b16 %v106
    %v183 = vunpack.c.h.b16 %v106
    %v184 = vunpack.c.l.b16 %v107
    %v185 = vunpack.c.h.b16 %v107
    %v186 = vunpack.c.l.b16 %v108
    %v187 = vunpack.c.h.b16 %v108
    %v188 = vunpack.c.l.b16 %v109
    %v189 = vunpack.c.h.b16 %v109
    %v190 = vunpack.c.l.b16 %v110
    %v191 = vunpack.c.h.b16 %v110
    %v192 = vunpack.c.l.b16 %v111
    %v193 = vunpack.c.h.b16 %v111
    %v194 = vunpack.c.l.b16 %v112
    %v195 = vunpack.c.h.b16 %v112
    %v196 = vunpack.c.l.b16 %v113
    %v197 = vunpack.c.h.b16 %v113
    %v198 = vunpack.c.l.b16 %v114
    %v199 = vunpack.c.h.b16 %v114
    %v200 = vunpack.c.l.b16 %v115
    %v201 = vunpack.c.h.b16 %v115
    %v202 = vunpack.c.l.b16 %v116
    %v203 = vunpack.c.h.b16 %v116
    %v204 = vunpack.c.l.b16 %v117
    %v205 = vunpack.c.h.b16 %v117
    %v206 = vunpack.c.l.b16 %v118
    %v207 = vunpack.c.h.b16 %v118
    %v208 = vunpack.c.l.b16 %v119
    %v209 = vunpack.c.h.b16 %v119
    %v210 = vunpack.c.l.b16 %v120
    %v211 = vunpack.c.h.b16 %v120
    %v212 = vunpack.c.l.b16 %v121
    %v213 = vunpack.c.h.b16 %v121
    %v214 = vunpack.c.l.b16 %v122
    %v215 = vunpack.c.h.b16 %v122
    %v216 = vunpack.c.l.b16 %v123
    %v217 = vunpack.c.h.b16 %v123
    %v218 = vunpack.c.l.b16 %v124
    %v219 = vunpack.c.h.b16 %v124
    %v220 = vunpack.c.l.b16 %v125
    %v221 = vunpack.c.h.b16 %v125
    %v222 = vpack.c.b16 %v162, %v158
    %v223 = vpack.c.b16 %v163, %v159
    %v224 = vpack.c.b16 %v164, %v160
    %v225 = vpack.c.b16 %v165, %v161
    %v226 = vpack.c.b16 %v170, %v166
    %v227 = vpack.c.b16 %v171, %v167
    %v228 = vpack.c.b16 %v172, %v168
    %v229 = vpack.c.b16 %v173, %v169
    %v230 = vpack.c.b16 %v178, %v174
    %v231 = vpack.c.b16 %v179, %v175
    %v232 = vpack.c.b16 %v180, %v176
    %v233 = vpack.c.b16 %v181, %v177
    %v234 = vpack.c.b16 %v186, %v182
    %v235 = vpack.c.b16 %v187, %v183
    %v236 = vpack.c.b16 %v188, %v184
    %v237 = vpack.c.b16 %v189, %v185
    %v238 = vpack.c.b16 %v194, %v190
    %v239 = vpack.c.b16 %v195, %v191
    %v240 = vpack.c.b16 %v196, %v192
    %v241 = vpack.c.b16 %v197, %v193
    %v242 = vpack.c.b16 %v202, %v198
    %v243 = vpack.c.b16 %v203, %v199
    %v244 = vpack.c.b16 %v204, %v200
    %v245 = vpack.c.b16 %v205, %v201
    %v246 = vpack.c.b16 %v210, %v206
    %v247 = vpack.c.b16 %v211, %v207
    %v248 = vpack.c.b16 %v212, %v208
    %v249 = vpack.c.b16 %v213, %v209
    %v250 = vpack.c.b16 %v218, %v214
    %v251 = vpack.c.b16 %v219, %v215
    %v252 = vpack.c.b16 %v220, %v216
    %v253 = vpack.c.b16 %v221, %v217
    %286 = vmatpush.bf16.msra.mxu0 %v250
    %287 = vmatpush.bf16.msra.mxu0 %v246
    %288 = vmatpush.bf16.msra.mxu0 %v242
    %289 = vmatpush.bf16.msra.mxu0 %v238
    %290 = vmatpush.bf16.msra.mxu0 %v234
    %291 = vmatpush.bf16.msra.mxu0 %v230
    %292 = vmatpush.bf16.msra.mxu0 %v226
    %293 = vmatpush.bf16.msra.mxu0 %v222
    %294 = vmatmul.bf16.gmra.mxu0 %v93
    %v295 = vpop.f32.mrf.mxu0
    %v296 = vadd.f32 0.0, %v295
    %v297 = vpop.f32.mrf.mxu0
    %298 = vdwg.mxu0
    %299 = vmatpush.bf16.msra.mxu0 %v251
    %300 = vmatpush.bf16.msra.mxu0 %v247
    %301 = vmatpush.bf16.msra.mxu0 %v243
    %302 = vmatpush.bf16.msra.mxu0 %v239
    %303 = vmatpush.bf16.msra.mxu0 %v235
    %304 = vmatpush.bf16.msra.mxu0 %v231
    %305 = vmatpush.bf16.msra.mxu0 %v227
    %306 = vmatpush.bf16.msra.mxu0 %v223
    %307 = vmatmul.bf16.gmra.mxu0 %v93
    %v308 = vpop.f32.mrf.mxu0
    %v309 = vadd.f32 0.0, %v308
    %v310 = vpop.f32.mrf.mxu0
    %311 = vdwg.mxu0
    %312 = vmatpush.bf16.msra.mxu0 %v252
    %313 = vmatpush.bf16.msra.mxu0 %v248
    %314 = vmatpush.bf16.msra.mxu0 %v244
    %315 = vmatpush.bf16.msra.mxu0 %v240
    %316 = vmatpush.bf16.msra.mxu0 %v236
    %317 = vmatpush.bf16.msra.mxu0 %v232
    %318 = vmatpush.bf16.msra.mxu0 %v228
    %319 = vmatpush.bf16.msra.mxu0 %v224
    %320 = vmatmul.bf16.gmra.mxu0 %v93
    %v321 = vpop.f32.mrf.mxu0
    %v322 = vadd.f32 0.0, %v321
    %v323 = vpop.f32.mrf.mxu0
    %324 = vdwg.mxu0
    %325 = vmatpush.bf16.msra.mxu0 %v253
    %326 = vmatpush.bf16.msra.mxu0 %v249
    %327 = vmatpush.bf16.msra.mxu0 %v245
    %328 = vmatpush.bf16.msra.mxu0 %v241
    %329 = vmatpush.bf16.msra.mxu0 %v237
    %330 = vmatpush.bf16.msra.mxu0 %v233
    %331 = vmatpush.bf16.msra.mxu0 %v229
    %332 = vmatpush.bf16.msra.mxu0 %v225
    %333 = vmatmul.bf16.gmra.mxu0 %v93
    %v334 = vpop.f32.mrf.mxu0
    %v335 = vadd.f32 0.0, %v334
    %v336 = vpop.f32.mrf.mxu0
    %337 = vdwg.mxu0
    %v338 = vadd.f32 %v88, %v296
    %v339 = vadd.f32 %v89, %v309
    %v340 = vadd.f32 %v90, %v322
    %v341 = vadd.f32 %v91, %v335
    %342 = vst [vmem:[#allocation2] sm:$0xff] %v338
    %343 = vst [vmem:[#allocation2 + $0x8] sm:$0xff] %v339
    %344 = vst [vmem:[#allocation2 + $0x10] sm:$0xff] %v340
    %345 = vst [vmem:[#allocation2 + $0x18] sm:$0xff] %v341
    // Predicated region
    $region42: #{tpu_custom_call.1} parent=1 // pred_check
      %p346 = pneg %p80
    $region43: #{tpu_custom_call.1} parent=1 // pred_check_branch
      %348 = sbr.rel (%p346) target = $region45
    $region44: #{tpu_custom_call.1} parent=1 // pred_region
      %v349 = vld [vmem:[#allocation2] sm:$0xff]
      %v350 = vld [vmem:[#allocation2 + $0x8] sm:$0xff]
      %v351 = vld [vmem:[#allocation2 + $0x10] sm:$0xff]
      %v352 = vld [vmem:[#allocation2 + $0x18] sm:$0xff]
      %v353 = vld [vmem:[#allocation8] sm:$0xf]
      %v355 = vperm.slane %v353, 0
      %v356 = vperm.slane %v353, 1
      %v357 = vperm.slane %v353, 2
      %v358 = vperm.slane %v353, 3
      %v363 = vadd.f32 %v349, %v355
      %v364 = vadd.f32 %v350, %v356
      %v365 = vadd.f32 %v351, %v357
      %v366 = vadd.f32 %v352, %v358
      %v367 = vmax.f32 %v363, 0.0
      %v368 = vmax.f32 %v364, 0.0
      %v369 = vmax.f32 %v365, 0.0
      %v370 = vmax.f32 %v366, 0.0
      %v371 = vpack.c.bf16 %v367, %v367
      %v372 = vpack.c.bf16 %v368, %v368
      %v373 = vpack.c.bf16 %v369, %v369
      %v374 = vpack.c.bf16 %v370, %v370
      %v375 = vld [vmem:[#allocation9] sm:$0xf]
      %v376 = vld [vmem:[#allocation9 + $0x4] sm:$0xf]
      %v377 = vld [vmem:[#allocation9 + $0x8] sm:$0xf]
      %v378 = vld [vmem:[#allocation9 + $0xc] sm:$0xf]
      %v379 = vld [vmem:[#allocation9 + $0x10] sm:$0xf]
      %v380 = vld [vmem:[#allocation9 + $0x14] sm:$0xf]
      %v381 = vld [vmem:[#allocation9 + $0x18] sm:$0xf]
      %v382 = vld [vmem:[#allocation9 + $0x1c] sm:$0xf]
      %v383 = vld [vmem:[#allocation9 + $0x20] sm:$0xf]
      %v384 = vld [vmem:[#allocation9 + $0x24] sm:$0xf]
      %v385 = vld [vmem:[#allocation9 + $0x28] sm:$0xf]
      %v386 = vld [vmem:[#allocation9 + $0x2c] sm:$0xf]
      %v387 = vld [vmem:[#allocation9 + $0x30] sm:$0xf]
      %v388 = vld [vmem:[#allocation9 + $0x34] sm:$0xf]
      %v389 = vld [vmem:[#allocation9 + $0x38] sm:$0xf]
      %v390 = vld [vmem:[#allocation9 + $0x3c] sm:$0xf]
      %v391 = vld [vmem:[#allocation9 + $0x40] sm:$0xf]
      %v392 = vld [vmem:[#allocation9 + $0x44] sm:$0xf]
      %v393 = vld [vmem:[#allocation9 + $0x48] sm:$0xf]
      %v394 = vld [vmem:[#allocation9 + $0x4c] sm:$0xf]
      %v395 = vld [vmem:[#allocation9 + $0x50] sm:$0xf]
      %v396 = vld [vmem:[#allocation9 + $0x54] sm:$0xf]
      %v397 = vld [vmem:[#allocation9 + $0x58] sm:$0xf]
      %v398 = vld [vmem:[#allocation9 + $0x5c] sm:$0xf]
      %v399 = vld [vmem:[#allocation9 + $0x60] sm:$0xf]
      %v400 = vld [vmem:[#allocation9 + $0x64] sm:$0xf]
      %v401 = vld [vmem:[#allocation9 + $0x68] sm:$0xf]
      %v402 = vld [vmem:[#allocation9 + $0x6c] sm:$0xf]
      %v403 = vld [vmem:[#allocation9 + $0x70] sm:$0xf]
      %v404 = vld [vmem:[#allocation9 + $0x74] sm:$0xf]
      %v405 = vld [vmem:[#allocation9 + $0x78] sm:$0xf]
      %v406 = vld [vmem:[#allocation9 + $0x7c] sm:$0xf]
      %v407 = vld [vmem:[#allocation9 + $0x80] sm:$0xf]
      %v408 = vld [vmem:[#allocation9 + $0x84] sm:$0xf]
      %v409 = vld [vmem:[#allocation9 + $0x88] sm:$0xf]
      %v410 = vld [vmem:[#allocation9 + $0x8c] sm:$0xf]
      %v411 = vld [vmem:[#allocation9 + $0x90] sm:$0xf]
      %v412 = vld [vmem:[#allocation9 + $0x94] sm:$0xf]
      %v413 = vld [vmem:[#allocation9 + $0x98] sm:$0xf]
      %v414 = vld [vmem:[#allocation9 + $0x9c] sm:$0xf]
      %v415 = vld [vmem:[#allocation9 + $0xa0] sm:$0xf]
      %v416 = vld [vmem:[#allocation9 + $0xa4] sm:$0xf]
      %v417 = vld [vmem:[#allocation9 + $0xa8] sm:$0xf]
      %v418 = vld [vmem:[#allocation9 + $0xac] sm:$0xf]
      %v419 = vld [vmem:[#allocation9 + $0xb0] sm:$0xf]
      %v420 = vld [vmem:[#allocation9 + $0xb4] sm:$0xf]
      %v421 = vld [vmem:[#allocation9 + $0xb8] sm:$0xf]
      %v422 = vld [vmem:[#allocation9 + $0xbc] sm:$0xf]
      %v423 = vld [vmem:[#allocation9 + $0xc0] sm:$0xf]
      %v424 = vld [vmem:[#allocation9 + $0xc4] sm:$0xf]
      %v425 = vld [vmem:[#allocation9 + $0xc8] sm:$0xf]
      %v426 = vld [vmem:[#allocation9 + $0xcc] sm:$0xf]
      %v427 = vld [vmem:[#allocation9 + $0xd0] sm:$0xf]
      %v428 = vld [vmem:[#allocation9 + $0xd4] sm:$0xf]
      %v429 = vld [vmem:[#allocation9 + $0xd8] sm:$0xf]
      %v430 = vld [vmem:[#allocation9 + $0xdc] sm:$0xf]
      %v431 = vld [vmem:[#allocation9 + $0xe0] sm:$0xf]
      %v432 = vld [vmem:[#allocation9 + $0xe4] sm:$0xf]
      %v433 = vld [vmem:[#allocation9 + $0xe8] sm:$0xf]
      %v434 = vld [vmem:[#allocation9 + $0xec] sm:$0xf]
      %v435 = vld [vmem:[#allocation9 + $0xf0] sm:$0xf]
      %v436 = vld [vmem:[#allocation9 + $0xf4] sm:$0xf]
      %v437 = vld [vmem:[#allocation9 + $0xf8] sm:$0xf]
      %v438 = vld [vmem:[#allocation9 + $0xfc] sm:$0xf]
      %v439 = vld [vmem:[%s4] sm:$0x1]
      %v441 = vperm.slane %v439, 0
      %v507 = vunpack.c.l.b16 %v375
      %v508 = vunpack.c.l.b16 %v376
      %v509 = vunpack.c.l.b16 %v377
      %v510 = vunpack.c.l.b16 %v378
      %v511 = vunpack.c.l.b16 %v379
      %v512 = vunpack.c.l.b16 %v380
      %v513 = vunpack.c.l.b16 %v381
      %v514 = vunpack.c.l.b16 %v382
      %v515 = vunpack.c.l.b16 %v383
      %v516 = vunpack.c.l.b16 %v384
      %v517 = vunpack.c.l.b16 %v385
      %v518 = vunpack.c.l.b16 %v386
      %v519 = vunpack.c.l.b16 %v387
      %v520 = vunpack.c.l.b16 %v388
      %v521 = vunpack.c.l.b16 %v389
      %v522 = vunpack.c.l.b16 %v390
      %v523 = vunpack.c.l.b16 %v391
      %v524 = vunpack.c.l.b16 %v392
      %v525 = vunpack.c.l.b16 %v393
      %v526 = vunpack.c.l.b16 %v394
      %v527 = vunpack.c.l.b16 %v395
      %v528 = vunpack.c.l.b16 %v396
      %v529 = vunpack.c.l.b16 %v397
      %v530 = vunpack.c.l.b16 %v398
      %v531 = vunpack.c.l.b16 %v399
      %v532 = vunpack.c.l.b16 %v400
      %v533 = vunpack.c.l.b16 %v401
      %v534 = vunpack.c.l.b16 %v402
      %v535 = vunpack.c.l.b16 %v403
      %v536 = vunpack.c.l.b16 %v404
      %v537 = vunpack.c.l.b16 %v405
      %v538 = vunpack.c.l.b16 %v406
      %v539 = vunpack.c.l.b16 %v407
      %v540 = vunpack.c.l.b16 %v408
      %v541 = vunpack.c.l.b16 %v409
      %v542 = vunpack.c.l.b16 %v410
      %v543 = vunpack.c.l.b16 %v411
      %v544 = vunpack.c.l.b16 %v412
      %v545 = vunpack.c.l.b16 %v413
      %v546 = vunpack.c.l.b16 %v414
      %v547 = vunpack.c.l.b16 %v415
      %v548 = vunpack.c.l.b16 %v416
      %v549 = vunpack.c.l.b16 %v417
      %v550 = vunpack.c.l.b16 %v418
      %v551 = vunpack.c.l.b16 %v419
      %v552 = vunpack.c.l.b16 %v420
      %v553 = vunpack.c.l.b16 %v421
      %v554 = vunpack.c.l.b16 %v422
      %v555 = vunpack.c.l.b16 %v423
      %v556 = vunpack.c.l.b16 %v424
      %v557 = vunpack.c.l.b16 %v425
      %v558 = vunpack.c.l.b16 %v426
      %v559 = vunpack.c.l.b16 %v427
      %v560 = vunpack.c.l.b16 %v428
      %v561 = vunpack.c.l.b16 %v429
      %v562 = vunpack.c.l.b16 %v430
      %v563 = vunpack.c.l.b16 %v431
      %v564 = vunpack.c.l.b16 %v432
      %v565 = vunpack.c.l.b16 %v433
      %v566 = vunpack.c.l.b16 %v434
      %v567 = vunpack.c.l.b16 %v435
      %v568 = vunpack.c.l.b16 %v436
      %v569 = vunpack.c.l.b16 %v437
      %v570 = vunpack.c.l.b16 %v438
      %v571 = vpack.c.b16 %v508, %v507
      %v572 = vpack.c.b16 %v510, %v509
      %v573 = vpack.c.b16 %v512, %v511
      %v574 = vpack.c.b16 %v514, %v513
      %v575 = vpack.c.b16 %v516, %v515
      %v576 = vpack.c.b16 %v518, %v517
      %v577 = vpack.c.b16 %v520, %v519
      %v578 = vpack.c.b16 %v522, %v521
      %v579 = vpack.c.b16 %v524, %v523
      %v580 = vpack.c.b16 %v526, %v525
      %v581 = vpack.c.b16 %v528, %v527
      %v582 = vpack.c.b16 %v530, %v529
      %v583 = vpack.c.b16 %v532, %v531
      %v584 = vpack.c.b16 %v534, %v533
      %v585 = vpack.c.b16 %v536, %v535
      %v586 = vpack.c.b16 %v538, %v537
      %v587 = vpack.c.b16 %v540, %v539
      %v588 = vpack.c.b16 %v542, %v541
      %v589 = vpack.c.b16 %v544, %v543
      %v590 = vpack.c.b16 %v546, %v545
      %v591 = vpack.c.b16 %v548, %v547
      %v592 = vpack.c.b16 %v550, %v549
      %v593 = vpack.c.b16 %v552, %v551
      %v594 = vpack.c.b16 %v554, %v553
      %v595 = vpack.c.b16 %v556, %v555
      %v596 = vpack.c.b16 %v558, %v557
      %v597 = vpack.c.b16 %v560, %v559
      %v598 = vpack.c.b16 %v562, %v561
      %v599 = vpack.c.b16 %v564, %v563
      %v600 = vpack.c.b16 %v566, %v565
      %v601 = vpack.c.b16 %v568, %v567
      %v602 = vpack.c.b16 %v570, %v569
      %635 = vmatpush.bf16.msra.mxu0 %v578
      %636 = vmatpush.bf16.msra.mxu0 %v577
      %637 = vmatpush.bf16.msra.mxu0 %v576
      %638 = vmatpush.bf16.msra.mxu0 %v575
      %639 = vmatpush.bf16.msra.mxu0 %v574
      %640 = vmatpush.bf16.msra.mxu0 %v573
      %641 = vmatpush.bf16.msra.mxu0 %v572
      %642 = vmatpush.bf16.msra.mxu0 %v571
      %643 = vmatmul.bf16.gmra.mxu0 %v371
      %v644 = vpop.f32.mrf.mxu0
      %v645 = vadd.f32 %v441, %v644
      %v646 = vpop.f32.mrf.mxu0
      %647 = vdwg.mxu0
      %648 = vmatpush.bf16.msra.mxu0 %v586
      %649 = vmatpush.bf16.msra.mxu0 %v585
      %650 = vmatpush.bf16.msra.mxu0 %v584
      %651 = vmatpush.bf16.msra.mxu0 %v583
      %652 = vmatpush.bf16.msra.mxu0 %v582
      %653 = vmatpush.bf16.msra.mxu0 %v581
      %654 = vmatpush.bf16.msra.mxu0 %v580
      %655 = vmatpush.bf16.msra.mxu0 %v579
      %656 = vmatmul.bf16.gmra.mxu0 %v372
      %v657 = vpop.f32.mrf.mxu0
      %v658 = vadd.f32 %v645, %v657
      %v659 = vpop.f32.mrf.mxu0
      %660 = vdwg.mxu0
      %661 = vmatpush.bf16.msra.mxu0 %v594
      %662 = vmatpush.bf16.msra.mxu0 %v593
      %663 = vmatpush.bf16.msra.mxu0 %v592
      %664 = vmatpush.bf16.msra.mxu0 %v591
      %665 = vmatpush.bf16.msra.mxu0 %v590
      %666 = vmatpush.bf16.msra.mxu0 %v589
      %667 = vmatpush.bf16.msra.mxu0 %v588
      %668 = vmatpush.bf16.msra.mxu0 %v587
      %669 = vmatmul.bf16.gmra.mxu0 %v373
      %v670 = vpop.f32.mrf.mxu0
      %v671 = vadd.f32 %v658, %v670
      %v672 = vpop.f32.mrf.mxu0
      %673 = vdwg.mxu0
      %674 = vmatpush.bf16.msra.mxu0 %v602
      %675 = vmatpush.bf16.msra.mxu0 %v601
      %676 = vmatpush.bf16.msra.mxu0 %v600
      %677 = vmatpush.bf16.msra.mxu0 %v599
      %678 = vmatpush.bf16.msra.mxu0 %v598
      %679 = vmatpush.bf16.msra.mxu0 %v597
      %680 = vmatpush.bf16.msra.mxu0 %v596
      %681 = vmatpush.bf16.msra.mxu0 %v595
      %682 = vmatmul.bf16.gmra.mxu0 %v374
      %v683 = vpop.f32.mrf.mxu0
      %v684 = vadd.f32 %v671, %v683
      %v685 = vpop.f32.mrf.mxu0
      %686 = vdwg.mxu0
      %v687 = vpack.c.bf16 %v684, %v684
      %688 = vst [vmem:[#allocation11] sm:$0xf] %v687
    $region45: #{tpu_custom_call.1} parent=1 // pred_fallthru
      _
    // Predicated region
    $region46: #{tpu_custom_call.1} parent=1 // pred_check
      _
    $region47: #{tpu_custom_call.1} parent=1 // pred_check_branch
      %690 = sbr.rel (0) target = $region49
    $region48: #{tpu_custom_call.1} parent=1 // pred_region
      %692 = vsyncadd [#allocation5], 0
      %s694 = sshll.u32 [#allocation11], 4
      %s695 = int_to_ptr.vmem [resolvable:$true] %s694
      %s696 = sshll.u32 %s5, 4
      %s697 = int_to_ptr.hbm [resolvable:$true] %s696
      %699 = dma.vmem_to_hbm [thread:$0]  %s695, 64, %s697, [#allocation5]
    $region49: #{tpu_custom_call.1} parent=1 // pred_fallthru
      _
    // Predicated region
    $region50: #{tpu_custom_call.1} parent=1 // pred_check
      _
    $region51: #{tpu_custom_call.1} parent=1 // pred_check_branch
      %701 = sbr.rel (0) target = $region53
    $region52: #{tpu_custom_call.1} parent=1 // pred_region
      %703 = dma.done [#allocation5], 64
    $region53: #{tpu_custom_call.1} parent=1 // pred_fallthru
      _
    %704 = vsyncpa [#allocation4], 1
    %705 = vsyncpa [#allocation7], 1
    %706 = vsyncpa [#allocation10], 1
    %707 = vsyncpa [#allocation5], 1

</llo_original>
